<compile_context>
chip_gen: v7x
topology: tpu7x:2x2x1
jax: 0.10.0
libtpu: 0.0.40
codegen_flags: <defaults>
</compile_context>

<pallas_src>
import functools
import math

import jax
import jax.numpy as jnp
import numpy as np
from jax.experimental import pallas as pl
from jax.experimental.pallas import tpu as pltpu


def _round_up(n, m):
    return -(-n // m) * m


def _poly_kernel(x_ref, a_ref, m_ref, c_ref, o_ref, *, degree):
    x = x_ref[...]                         # (TILE_R, L) flat view of x, lane-dense
    a = a_ref[...]                         # (D, L) lane-periodic coefficients
    bias = c_ref[0]                        # scalar from SMEM

    # Horner: sum_i a_i * x**(i+1) == x * (a_0 + x*(a_1 + x*(a_2 + ...)))
    acc = a[degree - 1:degree, :]          # (1, L) -> broadcast over rows
    for i in range(degree - 2, -1, -1):    # degree is static -> unrolled
        acc = acc * x + a[i:i + 1, :]
    y = acc * x                            # (TILE_R, L)

    # Reduce each group of C adjacent lanes (one batch sample) with a 0/1
    # matmul on the otherwise-idle MXU -> lane-dense (TILE_R, G) output.
    red = jnp.dot(y, m_ref[...],
                  preferred_element_type=jnp.float32,
                  precision=jax.lax.Precision.HIGHEST)
    o_ref[...] = (red + bias).astype(o_ref.dtype)


def polynomial_forward(x, a, c, *, max_tile_rows=2048):
    """x: (N, C) f32, a: (D, C) f32, c: (1,) f32  ->  (N,) f32."""
    N, C = x.shape
    D = a.shape[0]
    assert D >= 1, "degree must be >= 1"

    # Lane width: multiple of 128 (lane density) and of C (sample grouping).
    base = C * 128 // math.gcd(C, 128)          # lcm(C, 128)
    L = base * max(1, -(-512 // base))          # >= 512 lanes
    G = L // C                                  # samples per row

    # Zero-copy flat view; pad only to the next multiple of L (< L elements,
    # and skipped entirely when N*C is already L-aligned).
    n_elems = N * C
    flat = x.reshape(-1)
    P = _round_up(n_elems, L)
    if P != n_elems:
        flat = jnp.pad(flat, (0, P - n_elems))
    R = P // L
    x2d = flat.reshape(R, L)

    # Row tiling: single full-extent block when small, else multi-MiB blocks
    # (2048 x 512 f32 = 4 MiB) with a ragged last block handled by Pallas.
    if R <= max_tile_rows:
        tile_r, grid = R, 1
    else:
        tile_r = max_tile_rows                  # multiple of 8
        grid = pl.cdiv(R, tile_r)

    a_tiled = jnp.tile(a.astype(x.dtype), (1, G))                 # (D, L)
    red_mat = (jnp.arange(L, dtype=jnp.int32)[:, None] // C
               == jnp.arange(G, dtype=jnp.int32)[None, :]
               ).astype(x.dtype)                                  # (L, G) 0/1
    c_s = c.astype(x.dtype)                                       # (1,) -> SMEM

    out2d = pl.pallas_call(
        functools.partial(_poly_kernel, degree=D),
        out_shape=jax.ShapeDtypeStruct((R, G), x.dtype),
        grid=(grid,),
        in_specs=[
            pl.BlockSpec((tile_r, L), lambda i: (i, 0)),           # x tile
            pl.BlockSpec((D, L), lambda i: (0, 0)),                # coeffs, resident
            pl.BlockSpec((L, G), lambda i: (0, 0)),                # reduce mat, resident
            pl.BlockSpec(memory_space=pltpu.MemorySpace.SMEM),     # bias (scalar path)
        ],
        out_specs=pl.BlockSpec((tile_r, G), lambda i: (i, 0)),     # lane-dense output
        compiler_params=pltpu.CompilerParams(
            dimension_semantics=("parallel",),      # megacore splits row tiles (v7x)
            vmem_limit_bytes=32 * 1024 * 1024),     # headroom for 4 MiB double-buffered x
    )(x2d, a_tiled, red_mat, c_s)

    return out2d.reshape(-1)[:N]


def _reference(x, a, c):
    xn = np.asarray(x, np.float64)
    an = np.asarray(a, np.float64)
    cn = np.asarray(c, np.float64)
    D = an.shape[0]
    return sum(an[i, :] * xn ** (i + 1) for i in range(D)).sum(axis=1) + cn[0]


if __name__ == "__main__":
    key = jax.random.PRNGKey(0)
    kx, ka, kc, kx2, kx3 = jax.random.split(key, 5)

    # Small shapes consistent with the module: batch N=8, centers=4, degree=2.
    N, centers, degree = 8, 4, 2
    x = jax.random.normal(kx, (N, centers), dtype=jnp.float32)
    # Module __init__ uses zeros for a/c; use small random values to exercise compute.
    a = jax.random.normal(ka, (degree, centers), dtype=jnp.float32) * 0.1
    c = jax.random.normal(kc, (1,), dtype=jnp.float32) * 0.1

    y = jax.block_until_ready(polynomial_forward(x, a, c))
    np.testing.assert_allclose(np.asarray(y), _reference(x, a, c), rtol=1e-5, atol=1e-5)

    # Larger batch: multi-row single-tile path, N*C already lane-aligned (no pad).
    N2 = 2048
    x2 = jax.random.normal(kx2, (N2, centers), dtype=jnp.float32)
    y2 = jax.block_until_ready(polynomial_forward(x2, a, c))
    np.testing.assert_allclose(np.asarray(y2), _reference(x2, a, c), rtol=1e-5, atol=1e-5)

    # Multi-tile path: grid > 1, ragged last block, N not tile-aligned.
    N3 = 300000
    x3 = jax.random.normal(kx3, (N3, centers), dtype=jnp.float32)
    y3 = jax.block_until_ready(polynomial_forward(x3, a, c))
    np.testing.assert_allclose(np.asarray(y3), _reference(x3, a, c), rtol=1e-5, atol=1e-5)

    # TODO(synk): linear_reg (numpy pinv-based fitting) is a host-side training
    # helper, not part of forward; not implemented as a kernel.
    print("KERNEL_OK")
</pallas_src>

<mosaic_0001>
module attributes {stable_mosaic.version = 11 : i64} {
  func.func @_poly_kernel(%arg0: i32, %arg1: memref<1x512xf32, #tpu.memory_space<vmem>>, %arg2: memref<2x512xf32, #tpu.memory_space<vmem>>, %arg3: memref<512x128xf32, #tpu.memory_space<vmem>>, %arg4: memref<1xf32, #tpu.memory_space<smem>>, %arg5: memref<1x128xf32, #tpu.memory_space<vmem>>) attributes {dimension_semantics = [#tpu.dimension_semantics<parallel>], iteration_bounds = array<i64: 1>, scalar_prefetch = 0 : i64, scratch_operands = 0 : i64, tpu.core_type = #tpu.core_type<tc>, window_params = [{transform_indices = @transform_0, window_bounds = array<i64: 1, 512>}, {pipeline_mode = #tpu.pipeline_mode<synchronous>, transform_indices = @transform_1, window_bounds = array<i64: 2, 512>}, {pipeline_mode = #tpu.pipeline_mode<synchronous>, transform_indices = @transform_2, window_bounds = array<i64: 512, 128>}, {transform_indices = @transform_3, window_bounds = array<i64: 1>}, {transform_indices = @transform_4, window_bounds = array<i64: 1, 128>}]} {
    %c0 = arith.constant 0 : index
    %c0_0 = arith.constant 0 : index
    %0 = vector.load %arg1[%c0, %c0_0] : memref<1x512xf32, #tpu.memory_space<vmem>>, vector<1x512xf32>
    %c0_1 = arith.constant 0 : index
    %c0_2 = arith.constant 0 : index
    %1 = vector.load %arg2[%c0_1, %c0_2] : memref<2x512xf32, #tpu.memory_space<vmem>>, vector<2x512xf32>
    %c0_3 = arith.constant 0 : index
    %2 = memref.load %arg4[%c0_3] : memref<1xf32, #tpu.memory_space<smem>>
    %3 = vector.extract_strided_slice %1 {offsets = [1, 0], sizes = [1, 512], strides = [1, 1]} : vector<2x512xf32> to vector<1x512xf32>
    %4 = arith.mulf %3, %0 : vector<1x512xf32>
    %5 = vector.extract_strided_slice %1 {offsets = [0, 0], sizes = [1, 512], strides = [1, 1]} : vector<2x512xf32> to vector<1x512xf32>
    %6 = arith.addf %4, %5 : vector<1x512xf32>
    %7 = arith.mulf %6, %0 : vector<1x512xf32>
    %c0_4 = arith.constant 0 : index
    %c0_5 = arith.constant 0 : index
    %8 = vector.load %arg3[%c0_4, %c0_5] : memref<512x128xf32, #tpu.memory_space<vmem>>, vector<512x128xf32>
    %cst = arith.constant dense<0.000000e+00> : vector<1x128xf32>
    %9 = tpu.matmul %7, %8, %cst {dimension_numbers = #tpu.dot_dimension_numbers<[1], [0], [0], [1], [0, 0, 1, 1], [], []>, precision = #tpu.contract_precision<fp32>} : vector<1x512xf32>, vector<512x128xf32>, vector<1x128xf32> -> vector<1x128xf32>
    %10 = vector.broadcast %2 : f32 to vector<1x128xf32>
    %11 = arith.addf %9, %10 : vector<1x128xf32>
    %c0_6 = arith.constant 0 : index
    %c0_7 = arith.constant 0 : index
    %12 = vector.load %arg5[%c0_6, %c0_7] : memref<1x128xf32, #tpu.memory_space<vmem>>, vector<1x128xf32>
    tpu.vector_store %arg5[%c0_6, %c0_7], %11 {strides = array<i32>} : memref<1x128xf32, #tpu.memory_space<vmem>>, vector<1x128xf32>,
    return
  }
  func.func @transform_0(%arg0: i32) -> (i32, i32) {
    %c0_i32 = arith.constant 0 : i32
    %c0_i32_0 = arith.constant 0 : i32
    return %arg0, %c0_i32 : i32, i32
  }
  func.func @transform_1(%arg0: i32) -> (i32, i32) {
    %c0_i32 = arith.constant 0 : i32
    %c0_i32_0 = arith.constant 0 : i32
    %c0_i32_1 = arith.constant 0 : i32
    return %c0_i32, %c0_i32_0 : i32, i32
  }
  func.func @transform_2(%arg0: i32) -> (i32, i32) {
    %c0_i32 = arith.constant 0 : i32
    %c0_i32_0 = arith.constant 0 : i32
    %c0_i32_1 = arith.constant 0 : i32
    return %c0_i32, %c0_i32_0 : i32, i32
  }
  func.func @transform_3(%arg0: i32) -> i32 {
    %c0_i32 = arith.constant 0 : i32
    %c0_i32_0 = arith.constant 0 : i32
    return %c0_i32 : i32
  }
  func.func @transform_4(%arg0: i32) -> (i32, i32) {
    %c0_i32 = arith.constant 0 : i32
    %c0_i32_0 = arith.constant 0 : i32
    return %arg0, %c0_i32 : i32, i32
  }
}

</mosaic_0001>

<llo_original>
// kernel: tpu_custom_call.1
$region0: #{tpu_custom_call.1}
  #allocation0 [shape = 'u32[]', space=smem, size = 0x4, offset = 0x4, fixed_abs, tag = 'smem constant byte address 0x4 - core index']
  #allocation1 [shape = 'u32[144,128]{1,0:T(1,128)}', space=vmem, size = 0x12000, scoped, tag = 'internal scratch']
  #allocation2 [shape = 'f32[1]{0:T(128)S(6)}', space=smem, size = 0x200, scoped, tag = 'scoped memory for tpu_custom_call.1']
  %s0 = inlined_call_operand.hbm [shape: f32[1,512], index: 0, kind: input, shape index: {}]
  %s1 = inlined_call_operand.hbm [shape: f32[2,512], index: 1, kind: input, shape index: {}]
  %s2 = inlined_call_operand.hbm [shape: f32[512,128], index: 2, kind: input, shape index: {}]
  %s3 = inlined_call_operand.<no memory space> [shape: f32[1], index: 3, kind: input, shape index: {}]
  %s4 = inlined_call_operand.hbm [shape: f32[1,128], index: 4, kind: output, shape index: {}]
  %s5 = sld [smem:[#allocation0]]
  $region38: #{tpu_custom_call.1} parent=0
    _
  %s7 = ssub.s32 1, %s5
  %s8 = scalar_select 0, %s7, %s5
  %9 = sst [smem:[#allocation2]] %s3
  $region1: #{tpu_custom_call.1} parent=0
    #allocation3 [shape = 'u8[2048]{0}', space=vmem, size = 0x800, scoped, tag = 'input window, operand 0, single buffered']
    #allocation4 [shape = 's32[1]{0}', space=sflag, size = 0x4, scoped, tag = 'scoped memory for tpu_custom_call.1']
    #allocation5 [shape = 's32[1]{0}', space=sflag, size = 0x4, scoped, tag = 'scoped memory for tpu_custom_call.1']
    #allocation6 [shape = 'u8[4096]{0}', space=vmem, size = 0x1000, scoped, tag = 'input window, operand 1, single buffered']
    #allocation7 [shape = 's32[1]{0}', space=sflag, size = 0x4, scoped, tag = 'scoped memory for tpu_custom_call.1']
    #allocation8 [shape = 'u8[262144]{0}', space=vmem, size = 0x40000, scoped, tag = 'input window, operand 2, single buffered']
    #allocation9 [shape = 'u8[512]{0}', space=vmem, size = 0x400, scoped, tag = 'output window, operand 0, single buffered']
    %10 = vsyncpa [#allocation4], 0
    %11 = vsyncpa [#allocation7], 0
    %12 = vsyncpa [#allocation5], 0
    // Predicated region
    $region2: #{tpu_custom_call.1} parent=1 // pred_check
      _
    $region3: #{tpu_custom_call.1} parent=1 // pred_check_branch
      %14 = sbr.rel (0) target = $region5
    $region4: #{tpu_custom_call.1} parent=1 // pred_region
      %s16 = ssub.s32 64, 64
      %17 = vsyncadd [#allocation4], %s16
      %s19 = sshll.u32 [#allocation3], 4
      %s20 = int_to_ptr.vmem [resolvable:$true] %s19
      %22 = dma.hbm_to_vmem [thread:$0]  %s0, 64, %s20, [#allocation4]
    $region5: #{tpu_custom_call.1} parent=1 // pred_fallthru
      _
    // Predicated region
    $region6: #{tpu_custom_call.1} parent=1 // pred_check
      _
    $region7: #{tpu_custom_call.1} parent=1 // pred_check_branch
      %24 = sbr.rel (0) target = $region9
    $region8: #{tpu_custom_call.1} parent=1 // pred_region
      %s26 = ssub.s32 128, 128
      %27 = vsyncadd [#allocation7], %s26
      %s29 = sshll.u32 [#allocation6], 4
      %s30 = int_to_ptr.vmem [resolvable:$true] %s29
      %32 = dma.hbm_to_vmem [thread:$0]  %s1, 128, %s30, [#allocation7]
    $region9: #{tpu_custom_call.1} parent=1 // pred_fallthru
      _
    // Predicated region
    $region10: #{tpu_custom_call.1} parent=1 // pred_check
      _
    $region11: #{tpu_custom_call.1} parent=1 // pred_check_branch
      %34 = sbr.rel (0) target = $region13
    $region12: #{tpu_custom_call.1} parent=1 // pred_region
      %s36 = ssub.s32 8192, 8192
      %37 = vsyncadd [#allocation7], %s36
      %s38 = sshll.u32 [#allocation8], 4
      %s39 = int_to_ptr.vmem [resolvable:$true] %s38
      %44 = dma.hbm_to_vmem [thread:$0]  %s2, 8192, %s39, [#allocation7], 128, 128, 8
    $region13: #{tpu_custom_call.1} parent=1 // pred_fallthru
      _
    // Predicated region
    $region14: #{tpu_custom_call.1} parent=1 // pred_check
      _
    $region15: #{tpu_custom_call.1} parent=1 // pred_check_branch
      %46 = sbr.rel (0) target = $region17
    $region16: #{tpu_custom_call.1} parent=1 // pred_region
      _
    $region17: #{tpu_custom_call.1} parent=1 // pred_fallthru
      _
    // Predicated region
    $region18: #{tpu_custom_call.1} parent=1 // pred_check
      _
    $region19: #{tpu_custom_call.1} parent=1 // pred_check_branch
      %48 = sbr.rel (0) target = $region21
    $region20: #{tpu_custom_call.1} parent=1 // pred_region
      %49 = dma.done [#allocation4], 64
    $region21: #{tpu_custom_call.1} parent=1 // pred_fallthru
      _
    // Predicated region
    $region22: #{tpu_custom_call.1} parent=1 // pred_check
      _
    $region23: #{tpu_custom_call.1} parent=1 // pred_check_branch
      %51 = sbr.rel (0) target = $region25
    $region24: #{tpu_custom_call.1} parent=1 // pred_region
      %52 = dma.done [#allocation7], 128
    $region25: #{tpu_custom_call.1} parent=1 // pred_fallthru
      _
    // Predicated region
    $region26: #{tpu_custom_call.1} parent=1 // pred_check
      _
    $region27: #{tpu_custom_call.1} parent=1 // pred_check_branch
      %54 = sbr.rel (0) target = $region29
    $region28: #{tpu_custom_call.1} parent=1 // pred_region
      %55 = dma.done [#allocation7], 8192
    $region29: #{tpu_custom_call.1} parent=1 // pred_fallthru
      _
    %v56 = vld [vmem:[#allocation3] sm:$0xf]
    %v57 = vld [vmem:[#allocation6] sm:$0xff]
    %s58 = sld [smem:[#allocation2]]
    %v61 = vunpack.c.l.s4 857870592
    %v62 = vunpack.c.0.s8 %v61
    %v63 = vlaneseq
    %v64 = vshrl.u32 %v63, 7
    %v65 = vsub.s32 %v62, %v64
    %v66 = vrot.slane %v56, %v65
    %v68 = vmul.f32 %v57, %v66
    %v70 = vrot.slane %v57, 7
    %v72 = vadd.f32 %v68, %v70
    %v73 = vmul.f32 %v72, %v66
    %v74 = vld [vmem:[#allocation8] sm:$0xff]
    %v75 = vld [vmem:[#allocation8 + $0x8] sm:$0xff]
    %v76 = vld [vmem:[#allocation8 + $0x10] sm:$0xff]
    %v77 = vld [vmem:[#allocation8 + $0x18] sm:$0xff]
    %v78 = vld [vmem:[#allocation8 + $0x20] sm:$0xff]
    %v79 = vld [vmem:[#allocation8 + $0x28] sm:$0xff]
    %v80 = vld [vmem:[#allocation8 + $0x30] sm:$0xff]
    %v81 = vld [vmem:[#allocation8 + $0x38] sm:$0xff]
    %v82 = vld [vmem:[#allocation8 + $0x40] sm:$0xff]
    %v83 = vld [vmem:[#allocation8 + $0x48] sm:$0xff]
    %v84 = vld [vmem:[#allocation8 + $0x50] sm:$0xff]
    %v85 = vld [vmem:[#allocation8 + $0x58] sm:$0xff]
    %v86 = vld [vmem:[#allocation8 + $0x60] sm:$0xff]
    %v87 = vld [vmem:[#allocation8 + $0x68] sm:$0xff]
    %v88 = vld [vmem:[#allocation8 + $0x70] sm:$0xff]
    %v89 = vld [vmem:[#allocation8 + $0x78] sm:$0xff]
    %v90 = vld [vmem:[#allocation8 + $0x80] sm:$0xff]
    %v91 = vld [vmem:[#allocation8 + $0x88] sm:$0xff]
    %v92 = vld [vmem:[#allocation8 + $0x90] sm:$0xff]
    %v93 = vld [vmem:[#allocation8 + $0x98] sm:$0xff]
    %v94 = vld [vmem:[#allocation8 + $0xa0] sm:$0xff]
    %v95 = vld [vmem:[#allocation8 + $0xa8] sm:$0xff]
    %v96 = vld [vmem:[#allocation8 + $0xb0] sm:$0xff]
    %v97 = vld [vmem:[#allocation8 + $0xb8] sm:$0xff]
    %v98 = vld [vmem:[#allocation8 + $0xc0] sm:$0xff]
    %v99 = vld [vmem:[#allocation8 + $0xc8] sm:$0xff]
    %v100 = vld [vmem:[#allocation8 + $0xd0] sm:$0xff]
    %v101 = vld [vmem:[#allocation8 + $0xd8] sm:$0xff]
    %v102 = vld [vmem:[#allocation8 + $0xe0] sm:$0xff]
    %v103 = vld [vmem:[#allocation8 + $0xe8] sm:$0xff]
    %v104 = vld [vmem:[#allocation8 + $0xf0] sm:$0xff]
    %v105 = vld [vmem:[#allocation8 + $0xf8] sm:$0xff]
    %v106 = vld [vmem:[#allocation8 + $0x100] sm:$0xff]
    %v107 = vld [vmem:[#allocation8 + $0x108] sm:$0xff]
    %v108 = vld [vmem:[#allocation8 + $0x110] sm:$0xff]
    %v109 = vld [vmem:[#allocation8 + $0x118] sm:$0xff]
    %v110 = vld [vmem:[#allocation8 + $0x120] sm:$0xff]
    %v111 = vld [vmem:[#allocation8 + $0x128] sm:$0xff]
    %v112 = vld [vmem:[#allocation8 + $0x130] sm:$0xff]
    %v113 = vld [vmem:[#allocation8 + $0x138] sm:$0xff]
    %v114 = vld [vmem:[#allocation8 + $0x140] sm:$0xff]
    %v115 = vld [vmem:[#allocation8 + $0x148] sm:$0xff]
    %v116 = vld [vmem:[#allocation8 + $0x150] sm:$0xff]
    %v117 = vld [vmem:[#allocation8 + $0x158] sm:$0xff]
    %v118 = vld [vmem:[#allocation8 + $0x160] sm:$0xff]
    %v119 = vld [vmem:[#allocation8 + $0x168] sm:$0xff]
    %v120 = vld [vmem:[#allocation8 + $0x170] sm:$0xff]
    %v121 = vld [vmem:[#allocation8 + $0x178] sm:$0xff]
    %v122 = vld [vmem:[#allocation8 + $0x180] sm:$0xff]
    %v123 = vld [vmem:[#allocation8 + $0x188] sm:$0xff]
    %v124 = vld [vmem:[#allocation8 + $0x190] sm:$0xff]
    %v125 = vld [vmem:[#allocation8 + $0x198] sm:$0xff]
    %v126 = vld [vmem:[#allocation8 + $0x1a0] sm:$0xff]
    %v127 = vld [vmem:[#allocation8 + $0x1a8] sm:$0xff]
    %v128 = vld [vmem:[#allocation8 + $0x1b0] sm:$0xff]
    %v129 = vld [vmem:[#allocation8 + $0x1b8] sm:$0xff]
    %v130 = vld [vmem:[#allocation8 + $0x1c0] sm:$0xff]
    %v131 = vld [vmem:[#allocation8 + $0x1c8] sm:$0xff]
    %v132 = vld [vmem:[#allocation8 + $0x1d0] sm:$0xff]
    %v133 = vld [vmem:[#allocation8 + $0x1d8] sm:$0xff]
    %v134 = vld [vmem:[#allocation8 + $0x1e0] sm:$0xff]
    %v135 = vld [vmem:[#allocation8 + $0x1e8] sm:$0xff]
    %v136 = vld [vmem:[#allocation8 + $0x1f0] sm:$0xff]
    %v137 = vld [vmem:[#allocation8 + $0x1f8] sm:$0xff]
    %v138 = vstv %s58
    %v140 = vlaneseq
    %v141 = vshrl.u32 %v140, 7
    %v142 = vsub.s32 1, %v141
    %v143 = vrot.slane %v73, %v142
    %v144 = vlaneseq
    %v145 = vshrl.u32 %v144, 7
    %v146 = vsub.s32 3, %v145
    %v147 = vrot.slane %v73, %v146
    %v148 = vlaneseq
    %v149 = vshrl.u32 %v148, 7
    %v150 = vsub.s32 5, %v149
    %v151 = vrot.slane %v73, %v150
    %v152 = vlaneseq
    %v153 = vshrl.u32 %v152, 7
    %v154 = vsub.s32 7, %v153
    %v155 = vrot.slane %v73, %v154
    %160 = vmatprep.subr.mxu0 0.0
    %v161 = vand.u32 %v74, 4294901760
    %162 = vmatpush1.msra.mxu0 %v161
    %163 = vmatprep.subr.mxu0 0.0
    %v164 = vand.u32 %v75, 4294901760
    %165 = vmatpush1.msra.mxu0 %v164
    %166 = vmatprep.subr.mxu0 0.0
    %v167 = vand.u32 %v76, 4294901760
    %168 = vmatpush1.msra.mxu0 %v167
    %169 = vmatprep.subr.mxu0 0.0
    %v170 = vand.u32 %v77, 4294901760
    %171 = vmatpush1.msra.mxu0 %v170
    %172 = vmatprep.subr.mxu0 0.0
    %v173 = vand.u32 %v78, 4294901760
    %174 = vmatpush1.msra.mxu0 %v173
    %175 = vmatprep.subr.mxu0 0.0
    %v176 = vand.u32 %v79, 4294901760
    %177 = vmatpush1.msra.mxu0 %v176
    %178 = vmatprep.subr.mxu0 0.0
    %v179 = vand.u32 %v80, 4294901760
    %180 = vmatpush1.msra.mxu0 %v179
    %181 = vmatprep.subr.mxu0 0.0
    %v182 = vand.u32 %v81, 4294901760
    %183 = vmatpush1.msra.mxu0 %v182
    %184 = vmatprep.subr.mxu0 0.0
    %v185 = vand.u32 %v82, 4294901760
    %186 = vmatpush1.msra.mxu0 %v185
    %187 = vmatprep.subr.mxu0 0.0
    %v188 = vand.u32 %v83, 4294901760
    %189 = vmatpush1.msra.mxu0 %v188
    %190 = vmatprep.subr.mxu0 0.0
    %v191 = vand.u32 %v84, 4294901760
    %192 = vmatpush1.msra.mxu0 %v191
    %193 = vmatprep.subr.mxu0 0.0
    %v194 = vand.u32 %v85, 4294901760
    %195 = vmatpush1.msra.mxu0 %v194
    %196 = vmatprep.subr.mxu0 0.0
    %v197 = vand.u32 %v86, 4294901760
    %198 = vmatpush1.msra.mxu0 %v197
    %199 = vmatprep.subr.mxu0 0.0
    %v200 = vand.u32 %v87, 4294901760
    %201 = vmatpush1.msra.mxu0 %v200
    %202 = vmatprep.subr.mxu0 0.0
    %v203 = vand.u32 %v88, 4294901760
    %204 = vmatpush1.msra.mxu0 %v203
    %205 = vmatprep.subr.mxu0 0.0
    %v206 = vand.u32 %v89, 4294901760
    %207 = vmatpush1.msra.mxu0 %v206
    %208 = vmatprep.subr.mxu0 0.0
    %v209 = vand.u32 %v90, 4294901760
    %210 = vmatpush1.msra.mxu0 %v209
    %211 = vmatprep.subr.mxu0 0.0
    %v212 = vand.u32 %v91, 4294901760
    %213 = vmatpush1.msra.mxu0 %v212
    %214 = vmatprep.subr.mxu0 0.0
    %v215 = vand.u32 %v92, 4294901760
    %216 = vmatpush1.msra.mxu0 %v215
    %217 = vmatprep.subr.mxu0 0.0
    %v218 = vand.u32 %v93, 4294901760
    %219 = vmatpush1.msra.mxu0 %v218
    %220 = vmatprep.subr.mxu0 0.0
    %v221 = vand.u32 %v94, 4294901760
    %222 = vmatpush1.msra.mxu0 %v221
    %223 = vmatprep.subr.mxu0 0.0
    %v224 = vand.u32 %v95, 4294901760
    %225 = vmatpush1.msra.mxu0 %v224
    %226 = vmatprep.subr.mxu0 0.0
    %v227 = vand.u32 %v96, 4294901760
    %228 = vmatpush1.msra.mxu0 %v227
    %229 = vmatprep.subr.mxu0 0.0
    %v230 = vand.u32 %v97, 4294901760
    %231 = vmatpush1.msra.mxu0 %v230
    %232 = vmatprep.subr.mxu0 0.0
    %v233 = vand.u32 %v98, 4294901760
    %234 = vmatpush1.msra.mxu0 %v233
    %235 = vmatprep.subr.mxu0 0.0
    %v236 = vand.u32 %v99, 4294901760
    %237 = vmatpush1.msra.mxu0 %v236
    %238 = vmatprep.subr.mxu0 0.0
    %v239 = vand.u32 %v100, 4294901760
    %240 = vmatpush1.msra.mxu0 %v239
    %241 = vmatprep.subr.mxu0 0.0
    %v242 = vand.u32 %v101, 4294901760
    %243 = vmatpush1.msra.mxu0 %v242
    %244 = vmatprep.subr.mxu0 0.0
    %v245 = vand.u32 %v102, 4294901760
    %246 = vmatpush1.msra.mxu0 %v245
    %247 = vmatprep.subr.mxu0 0.0
    %v248 = vand.u32 %v103, 4294901760
    %249 = vmatpush1.msra.mxu0 %v248
    %250 = vmatprep.subr.mxu0 0.0
    %v251 = vand.u32 %v104, 4294901760
    %252 = vmatpush1.msra.mxu0 %v251
    %253 = vmatprep.subr.mxu0 0.0
    %v254 = vand.u32 %v105, 4294901760
    %255 = vmatpush1.msra.mxu0 %v254
    %v256 = vand.u32 %v147, 4294901760
    %v257 = vsub.f32 %v147, %v256
    %v258 = vand.u32 %v257, 4294901760
    %v259 = vsub.f32 %v257, %v258
    %v260 = vand.u32 %v259, 4294901760
    %261 = vmatprep.mubr.f32.mxu0 %v260
    %v262 = vand.u32 %v143, 4294901760
    %v263 = vsub.f32 %v143, %v262
    %v264 = vand.u32 %v263, 4294901760
    %v265 = vsub.f32 %v263, %v264
    %v266 = vand.u32 %v265, 4294901760
    %267 = vmatmul.mubr.f32.gmra.mrb[0].mxu0 %v266
    %v268 = vpop.f32.mrb[0].mxu0
    %v269 = vadd.f32 %v138, %v268
    %v270 = vpop.f32.mrb[0].mxu0
    %271 = vdwg.mxu0
    %272 = vmatprep.subr.mxu0 0.0
    %v273 = vand.u32 %v74, 4294901760
    %v274 = vsub.f32 %v74, %v273
    %v275 = vand.u32 %v274, 4294901760
    %v276 = vsub.f32 %v274, %v275
    %v277 = vand.u32 %v276, 4294901760
    %278 = vmatpush1.msra.mxu0 %v277
    %279 = vmatprep.subr.mxu0 0.0
    %v280 = vand.u32 %v75, 4294901760
    %v281 = vsub.f32 %v75, %v280
    %v282 = vand.u32 %v281, 4294901760
    %v283 = vsub.f32 %v281, %v282
    %v284 = vand.u32 %v283, 4294901760
    %285 = vmatpush1.msra.mxu0 %v284
    %286 = vmatprep.subr.mxu0 0.0
    %v287 = vand.u32 %v76, 4294901760
    %v288 = vsub.f32 %v76, %v287
    %v289 = vand.u32 %v288, 4294901760
    %v290 = vsub.f32 %v288, %v289
    %v291 = vand.u32 %v290, 4294901760
    %292 = vmatpush1.msra.mxu0 %v291
    %293 = vmatprep.subr.mxu0 0.0
    %v294 = vand.u32 %v77, 4294901760
    %v295 = vsub.f32 %v77, %v294
    %v296 = vand.u32 %v295, 4294901760
    %v297 = vsub.f32 %v295, %v296
    %v298 = vand.u32 %v297, 4294901760
    %299 = vmatpush1.msra.mxu0 %v298
    %300 = vmatprep.subr.mxu0 0.0
    %v301 = vand.u32 %v78, 4294901760
    %v302 = vsub.f32 %v78, %v301
    %v303 = vand.u32 %v302, 4294901760
    %v304 = vsub.f32 %v302, %v303
    %v305 = vand.u32 %v304, 4294901760
    %306 = vmatpush1.msra.mxu0 %v305
    %307 = vmatprep.subr.mxu0 0.0
    %v308 = vand.u32 %v79, 4294901760
    %v309 = vsub.f32 %v79, %v308
    %v310 = vand.u32 %v309, 4294901760
    %v311 = vsub.f32 %v309, %v310
    %v312 = vand.u32 %v311, 4294901760
    %313 = vmatpush1.msra.mxu0 %v312
    %314 = vmatprep.subr.mxu0 0.0
    %v315 = vand.u32 %v80, 4294901760
    %v316 = vsub.f32 %v80, %v315
    %v317 = vand.u32 %v316, 4294901760
    %v318 = vsub.f32 %v316, %v317
    %v319 = vand.u32 %v318, 4294901760
    %320 = vmatpush1.msra.mxu0 %v319
    %321 = vmatprep.subr.mxu0 0.0
    %v322 = vand.u32 %v81, 4294901760
    %v323 = vsub.f32 %v81, %v322
    %v324 = vand.u32 %v323, 4294901760
    %v325 = vsub.f32 %v323, %v324
    %v326 = vand.u32 %v325, 4294901760
    %327 = vmatpush1.msra.mxu0 %v326
    %328 = vmatprep.subr.mxu0 0.0
    %v329 = vand.u32 %v82, 4294901760
    %v330 = vsub.f32 %v82, %v329
    %v331 = vand.u32 %v330, 4294901760
    %v332 = vsub.f32 %v330, %v331
    %v333 = vand.u32 %v332, 4294901760
    %334 = vmatpush1.msra.mxu0 %v333
    %335 = vmatprep.subr.mxu0 0.0
    %v336 = vand.u32 %v83, 4294901760
    %v337 = vsub.f32 %v83, %v336
    %v338 = vand.u32 %v337, 4294901760
    %v339 = vsub.f32 %v337, %v338
    %v340 = vand.u32 %v339, 4294901760
    %341 = vmatpush1.msra.mxu0 %v340
    %342 = vmatprep.subr.mxu0 0.0
    %v343 = vand.u32 %v84, 4294901760
    %v344 = vsub.f32 %v84, %v343
    %v345 = vand.u32 %v344, 4294901760
    %v346 = vsub.f32 %v344, %v345
    %v347 = vand.u32 %v346, 4294901760
    %348 = vmatpush1.msra.mxu0 %v347
    %349 = vmatprep.subr.mxu0 0.0
    %v350 = vand.u32 %v85, 4294901760
    %v351 = vsub.f32 %v85, %v350
    %v352 = vand.u32 %v351, 4294901760
    %v353 = vsub.f32 %v351, %v352
    %v354 = vand.u32 %v353, 4294901760
    %355 = vmatpush1.msra.mxu0 %v354
    %356 = vmatprep.subr.mxu0 0.0
    %v357 = vand.u32 %v86, 4294901760
    %v358 = vsub.f32 %v86, %v357
    %v359 = vand.u32 %v358, 4294901760
    %v360 = vsub.f32 %v358, %v359
    %v361 = vand.u32 %v360, 4294901760
    %362 = vmatpush1.msra.mxu0 %v361
    %363 = vmatprep.subr.mxu0 0.0
    %v364 = vand.u32 %v87, 4294901760
    %v365 = vsub.f32 %v87, %v364
    %v366 = vand.u32 %v365, 4294901760
    %v367 = vsub.f32 %v365, %v366
    %v368 = vand.u32 %v367, 4294901760
    %369 = vmatpush1.msra.mxu0 %v368
    %370 = vmatprep.subr.mxu0 0.0
    %v371 = vand.u32 %v88, 4294901760
    %v372 = vsub.f32 %v88, %v371
    %v373 = vand.u32 %v372, 4294901760
    %v374 = vsub.f32 %v372, %v373
    %v375 = vand.u32 %v374, 4294901760
    %376 = vmatpush1.msra.mxu0 %v375
    %377 = vmatprep.subr.mxu0 0.0
    %v378 = vand.u32 %v89, 4294901760
    %v379 = vsub.f32 %v89, %v378
    %v380 = vand.u32 %v379, 4294901760
    %v381 = vsub.f32 %v379, %v380
    %v382 = vand.u32 %v381, 4294901760
    %383 = vmatpush1.msra.mxu0 %v382
    %384 = vmatprep.subr.mxu0 0.0
    %v385 = vand.u32 %v90, 4294901760
    %v386 = vsub.f32 %v90, %v385
    %v387 = vand.u32 %v386, 4294901760
    %v388 = vsub.f32 %v386, %v387
    %v389 = vand.u32 %v388, 4294901760
    %390 = vmatpush1.msra.mxu0 %v389
    %391 = vmatprep.subr.mxu0 0.0
    %v392 = vand.u32 %v91, 4294901760
    %v393 = vsub.f32 %v91, %v392
    %v394 = vand.u32 %v393, 4294901760
    %v395 = vsub.f32 %v393, %v394
    %v396 = vand.u32 %v395, 4294901760
    %397 = vmatpush1.msra.mxu0 %v396
    %398 = vmatprep.subr.mxu0 0.0
    %v399 = vand.u32 %v92, 4294901760
    %v400 = vsub.f32 %v92, %v399
    %v401 = vand.u32 %v400, 4294901760
    %v402 = vsub.f32 %v400, %v401
    %v403 = vand.u32 %v402, 4294901760
    %404 = vmatpush1.msra.mxu0 %v403
    %405 = vmatprep.subr.mxu0 0.0
    %v406 = vand.u32 %v93, 4294901760
    %v407 = vsub.f32 %v93, %v406
    %v408 = vand.u32 %v407, 4294901760
    %v409 = vsub.f32 %v407, %v408
    %v410 = vand.u32 %v409, 4294901760
    %411 = vmatpush1.msra.mxu0 %v410
    %412 = vmatprep.subr.mxu0 0.0
    %v413 = vand.u32 %v94, 4294901760
    %v414 = vsub.f32 %v94, %v413
    %v415 = vand.u32 %v414, 4294901760
    %v416 = vsub.f32 %v414, %v415
    %v417 = vand.u32 %v416, 4294901760
    %418 = vmatpush1.msra.mxu0 %v417
    %419 = vmatprep.subr.mxu0 0.0
    %v420 = vand.u32 %v95, 4294901760
    %v421 = vsub.f32 %v95, %v420
    %v422 = vand.u32 %v421, 4294901760
    %v423 = vsub.f32 %v421, %v422
    %v424 = vand.u32 %v423, 4294901760
    %425 = vmatpush1.msra.mxu0 %v424
    %426 = vmatprep.subr.mxu0 0.0
    %v427 = vand.u32 %v96, 4294901760
    %v428 = vsub.f32 %v96, %v427
    %v429 = vand.u32 %v428, 4294901760
    %v430 = vsub.f32 %v428, %v429
    %v431 = vand.u32 %v430, 4294901760
    %432 = vmatpush1.msra.mxu0 %v431
    %433 = vmatprep.subr.mxu0 0.0
    %v434 = vand.u32 %v97, 4294901760
    %v435 = vsub.f32 %v97, %v434
    %v436 = vand.u32 %v435, 4294901760
    %v437 = vsub.f32 %v435, %v436
    %v438 = vand.u32 %v437, 4294901760
    %439 = vmatpush1.msra.mxu0 %v438
    %440 = vmatprep.subr.mxu0 0.0
    %v441 = vand.u32 %v98, 4294901760
    %v442 = vsub.f32 %v98, %v441
    %v443 = vand.u32 %v442, 4294901760
    %v444 = vsub.f32 %v442, %v443
    %v445 = vand.u32 %v444, 4294901760
    %446 = vmatpush1.msra.mxu0 %v445
    %447 = vmatprep.subr.mxu0 0.0
    %v448 = vand.u32 %v99, 4294901760
    %v449 = vsub.f32 %v99, %v448
    %v450 = vand.u32 %v449, 4294901760
    %v451 = vsub.f32 %v449, %v450
    %v452 = vand.u32 %v451, 4294901760
    %453 = vmatpush1.msra.mxu0 %v452
    %454 = vmatprep.subr.mxu0 0.0
    %v455 = vand.u32 %v100, 4294901760
    %v456 = vsub.f32 %v100, %v455
    %v457 = vand.u32 %v456, 4294901760
    %v458 = vsub.f32 %v456, %v457
    %v459 = vand.u32 %v458, 4294901760
    %460 = vmatpush1.msra.mxu0 %v459
    %461 = vmatprep.subr.mxu0 0.0
    %v462 = vand.u32 %v101, 4294901760
    %v463 = vsub.f32 %v101, %v462
    %v464 = vand.u32 %v463, 4294901760
    %v465 = vsub.f32 %v463, %v464
    %v466 = vand.u32 %v465, 4294901760
    %467 = vmatpush1.msra.mxu0 %v466
    %468 = vmatprep.subr.mxu0 0.0
    %v469 = vand.u32 %v102, 4294901760
    %v470 = vsub.f32 %v102, %v469
    %v471 = vand.u32 %v470, 4294901760
    %v472 = vsub.f32 %v470, %v471
    %v473 = vand.u32 %v472, 4294901760
    %474 = vmatpush1.msra.mxu0 %v473
    %475 = vmatprep.subr.mxu0 0.0
    %v476 = vand.u32 %v103, 4294901760
    %v477 = vsub.f32 %v103, %v476
    %v478 = vand.u32 %v477, 4294901760
    %v479 = vsub.f32 %v477, %v478
    %v480 = vand.u32 %v479, 4294901760
    %481 = vmatpush1.msra.mxu0 %v480
    %482 = vmatprep.subr.mxu0 0.0
    %v483 = vand.u32 %v104, 4294901760
    %v484 = vsub.f32 %v104, %v483
    %v485 = vand.u32 %v484, 4294901760
    %v486 = vsub.f32 %v484, %v485
    %v487 = vand.u32 %v486, 4294901760
    %488 = vmatpush1.msra.mxu0 %v487
    %489 = vmatprep.subr.mxu0 0.0
    %v490 = vand.u32 %v105, 4294901760
    %v491 = vsub.f32 %v105, %v490
    %v492 = vand.u32 %v491, 4294901760
    %v493 = vsub.f32 %v491, %v492
    %v494 = vand.u32 %v493, 4294901760
    %495 = vmatpush1.msra.mxu0 %v494
    %v496 = vand.u32 %v147, 4294901760
    %497 = vmatprep.mubr.f32.mxu0 %v496
    %v498 = vand.u32 %v143, 4294901760
    %499 = vmatmul.mubr.f32.gmra.mrb[0].mxu0 %v498
    %v500 = vpop.f32.mrb[0].mxu0
    %v501 = vadd.f32 %v269, %v500
    %v502 = vpop.f32.mrb[0].mxu0
    %503 = vdwg.mxu0
    %504 = vmatprep.subr.mxu0 0.0
    %v505 = vand.u32 %v74, 4294901760
    %v506 = vsub.f32 %v74, %v505
    %507 = vmatpush1.msra.mxu0 %v506
    %508 = vmatprep.subr.mxu0 0.0
    %v509 = vand.u32 %v75, 4294901760
    %v510 = vsub.f32 %v75, %v509
    %511 = vmatpush1.msra.mxu0 %v510
    %512 = vmatprep.subr.mxu0 0.0
    %v513 = vand.u32 %v76, 4294901760
    %v514 = vsub.f32 %v76, %v513
    %515 = vmatpush1.msra.mxu0 %v514
    %516 = vmatprep.subr.mxu0 0.0
    %v517 = vand.u32 %v77, 4294901760
    %v518 = vsub.f32 %v77, %v517
    %519 = vmatpush1.msra.mxu0 %v518
    %520 = vmatprep.subr.mxu0 0.0
    %v521 = vand.u32 %v78, 4294901760
    %v522 = vsub.f32 %v78, %v521
    %523 = vmatpush1.msra.mxu0 %v522
    %524 = vmatprep.subr.mxu0 0.0
    %v525 = vand.u32 %v79, 4294901760
    %v526 = vsub.f32 %v79, %v525
    %527 = vmatpush1.msra.mxu0 %v526
    %528 = vmatprep.subr.mxu0 0.0
    %v529 = vand.u32 %v80, 4294901760
    %v530 = vsub.f32 %v80, %v529
    %531 = vmatpush1.msra.mxu0 %v530
    %532 = vmatprep.subr.mxu0 0.0
    %v533 = vand.u32 %v81, 4294901760
    %v534 = vsub.f32 %v81, %v533
    %535 = vmatpush1.msra.mxu0 %v534
    %536 = vmatprep.subr.mxu0 0.0
    %v537 = vand.u32 %v82, 4294901760
    %v538 = vsub.f32 %v82, %v537
    %539 = vmatpush1.msra.mxu0 %v538
    %540 = vmatprep.subr.mxu0 0.0
    %v541 = vand.u32 %v83, 4294901760
    %v542 = vsub.f32 %v83, %v541
    %543 = vmatpush1.msra.mxu0 %v542
    %544 = vmatprep.subr.mxu0 0.0
    %v545 = vand.u32 %v84, 4294901760
    %v546 = vsub.f32 %v84, %v545
    %547 = vmatpush1.msra.mxu0 %v546
    %548 = vmatprep.subr.mxu0 0.0
    %v549 = vand.u32 %v85, 4294901760
    %v550 = vsub.f32 %v85, %v549
    %551 = vmatpush1.msra.mxu0 %v550
    %552 = vmatprep.subr.mxu0 0.0
    %v553 = vand.u32 %v86, 4294901760
    %v554 = vsub.f32 %v86, %v553
    %555 = vmatpush1.msra.mxu0 %v554
    %556 = vmatprep.subr.mxu0 0.0
    %v557 = vand.u32 %v87, 4294901760
    %v558 = vsub.f32 %v87, %v557
    %559 = vmatpush1.msra.mxu0 %v558
    %560 = vmatprep.subr.mxu0 0.0
    %v561 = vand.u32 %v88, 4294901760
    %v562 = vsub.f32 %v88, %v561
    %563 = vmatpush1.msra.mxu0 %v562
    %564 = vmatprep.subr.mxu0 0.0
    %v565 = vand.u32 %v89, 4294901760
    %v566 = vsub.f32 %v89, %v565
    %567 = vmatpush1.msra.mxu0 %v566
    %568 = vmatprep.subr.mxu0 0.0
    %v569 = vand.u32 %v90, 4294901760
    %v570 = vsub.f32 %v90, %v569
    %571 = vmatpush1.msra.mxu0 %v570
    %572 = vmatprep.subr.mxu0 0.0
    %v573 = vand.u32 %v91, 4294901760
    %v574 = vsub.f32 %v91, %v573
    %575 = vmatpush1.msra.mxu0 %v574
    %576 = vmatprep.subr.mxu0 0.0
    %v577 = vand.u32 %v92, 4294901760
    %v578 = vsub.f32 %v92, %v577
    %579 = vmatpush1.msra.mxu0 %v578
    %580 = vmatprep.subr.mxu0 0.0
    %v581 = vand.u32 %v93, 4294901760
    %v582 = vsub.f32 %v93, %v581
    %583 = vmatpush1.msra.mxu0 %v582
    %584 = vmatprep.subr.mxu0 0.0
    %v585 = vand.u32 %v94, 4294901760
    %v586 = vsub.f32 %v94, %v585
    %587 = vmatpush1.msra.mxu0 %v586
    %588 = vmatprep.subr.mxu0 0.0
    %v589 = vand.u32 %v95, 4294901760
    %v590 = vsub.f32 %v95, %v589
    %591 = vmatpush1.msra.mxu0 %v590
    %592 = vmatprep.subr.mxu0 0.0
    %v593 = vand.u32 %v96, 4294901760
    %v594 = vsub.f32 %v96, %v593
    %595 = vmatpush1.msra.mxu0 %v594
    %596 = vmatprep.subr.mxu0 0.0
    %v597 = vand.u32 %v97, 4294901760
    %v598 = vsub.f32 %v97, %v597
    %599 = vmatpush1.msra.mxu0 %v598
    %600 = vmatprep.subr.mxu0 0.0
    %v601 = vand.u32 %v98, 4294901760
    %v602 = vsub.f32 %v98, %v601
    %603 = vmatpush1.msra.mxu0 %v602
    %604 = vmatprep.subr.mxu0 0.0
    %v605 = vand.u32 %v99, 4294901760
    %v606 = vsub.f32 %v99, %v605
    %607 = vmatpush1.msra.mxu0 %v606
    %608 = vmatprep.subr.mxu0 0.0
    %v609 = vand.u32 %v100, 4294901760
    %v610 = vsub.f32 %v100, %v609
    %611 = vmatpush1.msra.mxu0 %v610
    %612 = vmatprep.subr.mxu0 0.0
    %v613 = vand.u32 %v101, 4294901760
    %v614 = vsub.f32 %v101, %v613
    %615 = vmatpush1.msra.mxu0 %v614
    %616 = vmatprep.subr.mxu0 0.0
    %v617 = vand.u32 %v102, 4294901760
    %v618 = vsub.f32 %v102, %v617
    %619 = vmatpush1.msra.mxu0 %v618
    %620 = vmatprep.subr.mxu0 0.0
    %v621 = vand.u32 %v103, 4294901760
    %v622 = vsub.f32 %v103, %v621
    %623 = vmatpush1.msra.mxu0 %v622
    %624 = vmatprep.subr.mxu0 0.0
    %v625 = vand.u32 %v104, 4294901760
    %v626 = vsub.f32 %v104, %v625
    %627 = vmatpush1.msra.mxu0 %v626
    %628 = vmatprep.subr.mxu0 0.0
    %v629 = vand.u32 %v105, 4294901760
    %v630 = vsub.f32 %v105, %v629
    %631 = vmatpush1.msra.mxu0 %v630
    %v632 = vand.u32 %v147, 4294901760
    %v633 = vsub.f32 %v147, %v632
    %634 = vmatprep.mubr.f32.mxu0 %v633
    %v635 = vand.u32 %v143, 4294901760
    %v636 = vsub.f32 %v143, %v635
    %637 = vmatmul.mubr.f32.gmra.mrb[0].mxu0 %v636
    %v638 = vpop.f32.mrb[0].mxu0
    %v639 = vadd.f32 %v501, %v638
    %v640 = vpop.f32.mrb[0].mxu0
    %641 = vdwg.mxu0
    %642 = vmatprep.subr.mxu0 0.0
    %v643 = vand.u32 %v74, 4294901760
    %644 = vmatpush1.msra.mxu0 %v643
    %645 = vmatprep.subr.mxu0 0.0
    %v646 = vand.u32 %v75, 4294901760
    %647 = vmatpush1.msra.mxu0 %v646
    %648 = vmatprep.subr.mxu0 0.0
    %v649 = vand.u32 %v76, 4294901760
    %650 = vmatpush1.msra.mxu0 %v649
    %651 = vmatprep.subr.mxu0 0.0
    %v652 = vand.u32 %v77, 4294901760
    %653 = vmatpush1.msra.mxu0 %v652
    %654 = vmatprep.subr.mxu0 0.0
    %v655 = vand.u32 %v78, 4294901760
    %656 = vmatpush1.msra.mxu0 %v655
    %657 = vmatprep.subr.mxu0 0.0
    %v658 = vand.u32 %v79, 4294901760
    %659 = vmatpush1.msra.mxu0 %v658
    %660 = vmatprep.subr.mxu0 0.0
    %v661 = vand.u32 %v80, 4294901760
    %662 = vmatpush1.msra.mxu0 %v661
    %663 = vmatprep.subr.mxu0 0.0
    %v664 = vand.u32 %v81, 4294901760
    %665 = vmatpush1.msra.mxu0 %v664
    %666 = vmatprep.subr.mxu0 0.0
    %v667 = vand.u32 %v82, 4294901760
    %668 = vmatpush1.msra.mxu0 %v667
    %669 = vmatprep.subr.mxu0 0.0
    %v670 = vand.u32 %v83, 4294901760
    %671 = vmatpush1.msra.mxu0 %v670
    %672 = vmatprep.subr.mxu0 0.0
    %v673 = vand.u32 %v84, 4294901760
    %674 = vmatpush1.msra.mxu0 %v673
    %675 = vmatprep.subr.mxu0 0.0
    %v676 = vand.u32 %v85, 4294901760
    %677 = vmatpush1.msra.mxu0 %v676
    %678 = vmatprep.subr.mxu0 0.0
    %v679 = vand.u32 %v86, 4294901760
    %680 = vmatpush1.msra.mxu0 %v679
    %681 = vmatprep.subr.mxu0 0.0
    %v682 = vand.u32 %v87, 4294901760
    %683 = vmatpush1.msra.mxu0 %v682
    %684 = vmatprep.subr.mxu0 0.0
    %v685 = vand.u32 %v88, 4294901760
    %686 = vmatpush1.msra.mxu0 %v685
    %687 = vmatprep.subr.mxu0 0.0
    %v688 = vand.u32 %v89, 4294901760
    %689 = vmatpush1.msra.mxu0 %v688
    %690 = vmatprep.subr.mxu0 0.0
    %v691 = vand.u32 %v90, 4294901760
    %692 = vmatpush1.msra.mxu0 %v691
    %693 = vmatprep.subr.mxu0 0.0
    %v694 = vand.u32 %v91, 4294901760
    %695 = vmatpush1.msra.mxu0 %v694
    %696 = vmatprep.subr.mxu0 0.0
    %v697 = vand.u32 %v92, 4294901760
    %698 = vmatpush1.msra.mxu0 %v697
    %699 = vmatprep.subr.mxu0 0.0
    %v700 = vand.u32 %v93, 4294901760
    %701 = vmatpush1.msra.mxu0 %v700
    %702 = vmatprep.subr.mxu0 0.0
    %v703 = vand.u32 %v94, 4294901760
    %704 = vmatpush1.msra.mxu0 %v703
    %705 = vmatprep.subr.mxu0 0.0
    %v706 = vand.u32 %v95, 4294901760
    %707 = vmatpush1.msra.mxu0 %v706
    %708 = vmatprep.subr.mxu0 0.0
    %v709 = vand.u32 %v96, 4294901760
    %710 = vmatpush1.msra.mxu0 %v709
    %711 = vmatprep.subr.mxu0 0.0
    %v712 = vand.u32 %v97, 4294901760
    %713 = vmatpush1.msra.mxu0 %v712
    %714 = vmatprep.subr.mxu0 0.0
    %v715 = vand.u32 %v98, 4294901760
    %716 = vmatpush1.msra.mxu0 %v715
    %717 = vmatprep.subr.mxu0 0.0
    %v718 = vand.u32 %v99, 4294901760
    %719 = vmatpush1.msra.mxu0 %v718
    %720 = vmatprep.subr.mxu0 0.0
    %v721 = vand.u32 %v100, 4294901760
    %722 = vmatpush1.msra.mxu0 %v721
    %723 = vmatprep.subr.mxu0 0.0
    %v724 = vand.u32 %v101, 4294901760
    %725 = vmatpush1.msra.mxu0 %v724
    %726 = vmatprep.subr.mxu0 0.0
    %v727 = vand.u32 %v102, 4294901760
    %728 = vmatpush1.msra.mxu0 %v727
    %729 = vmatprep.subr.mxu0 0.0
    %v730 = vand.u32 %v103, 4294901760
    %731 = vmatpush1.msra.mxu0 %v730
    %732 = vmatprep.subr.mxu0 0.0
    %v733 = vand.u32 %v104, 4294901760
    %734 = vmatpush1.msra.mxu0 %v733
    %735 = vmatprep.subr.mxu0 0.0
    %v736 = vand.u32 %v105, 4294901760
    %737 = vmatpush1.msra.mxu0 %v736
    %v738 = vand.u32 %v147, 4294901760
    %v739 = vsub.f32 %v147, %v738
    %v740 = vand.u32 %v739, 4294901760
    %741 = vmatprep.mubr.f32.mxu0 %v740
    %v742 = vand.u32 %v143, 4294901760
    %v743 = vsub.f32 %v143, %v742
    %v744 = vand.u32 %v743, 4294901760
    %745 = vmatmul.mubr.f32.gmra.mrb[0].mxu0 %v744
    %v746 = vpop.f32.mrb[0].mxu0
    %v747 = vadd.f32 %v639, %v746
    %v748 = vpop.f32.mrb[0].mxu0
    %749 = vdwg.mxu0
    %750 = vmatprep.subr.mxu0 0.0
    %v751 = vand.u32 %v74, 4294901760
    %v752 = vsub.f32 %v74, %v751
    %v753 = vand.u32 %v752, 4294901760
    %754 = vmatpush1.msra.mxu0 %v753
    %755 = vmatprep.subr.mxu0 0.0
    %v756 = vand.u32 %v75, 4294901760
    %v757 = vsub.f32 %v75, %v756
    %v758 = vand.u32 %v757, 4294901760
    %759 = vmatpush1.msra.mxu0 %v758
    %760 = vmatprep.subr.mxu0 0.0
    %v761 = vand.u32 %v76, 4294901760
    %v762 = vsub.f32 %v76, %v761
    %v763 = vand.u32 %v762, 4294901760
    %764 = vmatpush1.msra.mxu0 %v763
    %765 = vmatprep.subr.mxu0 0.0
    %v766 = vand.u32 %v77, 4294901760
    %v767 = vsub.f32 %v77, %v766
    %v768 = vand.u32 %v767, 4294901760
    %769 = vmatpush1.msra.mxu0 %v768
    %770 = vmatprep.subr.mxu0 0.0
    %v771 = vand.u32 %v78, 4294901760
    %v772 = vsub.f32 %v78, %v771
    %v773 = vand.u32 %v772, 4294901760
    %774 = vmatpush1.msra.mxu0 %v773
    %775 = vmatprep.subr.mxu0 0.0
    %v776 = vand.u32 %v79, 4294901760
    %v777 = vsub.f32 %v79, %v776
    %v778 = vand.u32 %v777, 4294901760
    %779 = vmatpush1.msra.mxu0 %v778
    %780 = vmatprep.subr.mxu0 0.0
    %v781 = vand.u32 %v80, 4294901760
    %v782 = vsub.f32 %v80, %v781
    %v783 = vand.u32 %v782, 4294901760
    %784 = vmatpush1.msra.mxu0 %v783
    %785 = vmatprep.subr.mxu0 0.0
    %v786 = vand.u32 %v81, 4294901760
    %v787 = vsub.f32 %v81, %v786
    %v788 = vand.u32 %v787, 4294901760
    %789 = vmatpush1.msra.mxu0 %v788
    %790 = vmatprep.subr.mxu0 0.0
    %v791 = vand.u32 %v82, 4294901760
    %v792 = vsub.f32 %v82, %v791
    %v793 = vand.u32 %v792, 4294901760
    %794 = vmatpush1.msra.mxu0 %v793
    %795 = vmatprep.subr.mxu0 0.0
    %v796 = vand.u32 %v83, 4294901760
    %v797 = vsub.f32 %v83, %v796
    %v798 = vand.u32 %v797, 4294901760
    %799 = vmatpush1.msra.mxu0 %v798
    %800 = vmatprep.subr.mxu0 0.0
    %v801 = vand.u32 %v84, 4294901760
    %v802 = vsub.f32 %v84, %v801
    %v803 = vand.u32 %v802, 4294901760
    %804 = vmatpush1.msra.mxu0 %v803
    %805 = vmatprep.subr.mxu0 0.0
    %v806 = vand.u32 %v85, 4294901760
    %v807 = vsub.f32 %v85, %v806
    %v808 = vand.u32 %v807, 4294901760
    %809 = vmatpush1.msra.mxu0 %v808
    %810 = vmatprep.subr.mxu0 0.0
    %v811 = vand.u32 %v86, 4294901760
    %v812 = vsub.f32 %v86, %v811
    %v813 = vand.u32 %v812, 4294901760
    %814 = vmatpush1.msra.mxu0 %v813
    %815 = vmatprep.subr.mxu0 0.0
    %v816 = vand.u32 %v87, 4294901760
    %v817 = vsub.f32 %v87, %v816
    %v818 = vand.u32 %v817, 4294901760
    %819 = vmatpush1.msra.mxu0 %v818
    %820 = vmatprep.subr.mxu0 0.0
    %v821 = vand.u32 %v88, 4294901760
    %v822 = vsub.f32 %v88, %v821
    %v823 = vand.u32 %v822, 4294901760
    %824 = vmatpush1.msra.mxu0 %v823
    %825 = vmatprep.subr.mxu0 0.0
    %v826 = vand.u32 %v89, 4294901760
    %v827 = vsub.f32 %v89, %v826
    %v828 = vand.u32 %v827, 4294901760
    %829 = vmatpush1.msra.mxu0 %v828
    %830 = vmatprep.subr.mxu0 0.0
    %v831 = vand.u32 %v90, 4294901760
    %v832 = vsub.f32 %v90, %v831
    %v833 = vand.u32 %v832, 4294901760
    %834 = vmatpush1.msra.mxu0 %v833
    %835 = vmatprep.subr.mxu0 0.0
    %v836 = vand.u32 %v91, 4294901760
    %v837 = vsub.f32 %v91, %v836
    %v838 = vand.u32 %v837, 4294901760
    %839 = vmatpush1.msra.mxu0 %v838
    %840 = vmatprep.subr.mxu0 0.0
    %v841 = vand.u32 %v92, 4294901760
    %v842 = vsub.f32 %v92, %v841
    %v843 = vand.u32 %v842, 4294901760
    %844 = vmatpush1.msra.mxu0 %v843
    %845 = vmatprep.subr.mxu0 0.0
    %v846 = vand.u32 %v93, 4294901760
    %v847 = vsub.f32 %v93, %v846
    %v848 = vand.u32 %v847, 4294901760
    %849 = vmatpush1.msra.mxu0 %v848
    %850 = vmatprep.subr.mxu0 0.0
    %v851 = vand.u32 %v94, 4294901760
    %v852 = vsub.f32 %v94, %v851
    %v853 = vand.u32 %v852, 4294901760
    %854 = vmatpush1.msra.mxu0 %v853
    %855 = vmatprep.subr.mxu0 0.0
    %v856 = vand.u32 %v95, 4294901760
    %v857 = vsub.f32 %v95, %v856
    %v858 = vand.u32 %v857, 4294901760
    %859 = vmatpush1.msra.mxu0 %v858
    %860 = vmatprep.subr.mxu0 0.0
    %v861 = vand.u32 %v96, 4294901760
    %v862 = vsub.f32 %v96, %v861
    %v863 = vand.u32 %v862, 4294901760
    %864 = vmatpush1.msra.mxu0 %v863
    %865 = vmatprep.subr.mxu0 0.0
    %v866 = vand.u32 %v97, 4294901760
    %v867 = vsub.f32 %v97, %v866
    %v868 = vand.u32 %v867, 4294901760
    %869 = vmatpush1.msra.mxu0 %v868
    %870 = vmatprep.subr.mxu0 0.0
    %v871 = vand.u32 %v98, 4294901760
    %v872 = vsub.f32 %v98, %v871
    %v873 = vand.u32 %v872, 4294901760
    %874 = vmatpush1.msra.mxu0 %v873
    %875 = vmatprep.subr.mxu0 0.0
    %v876 = vand.u32 %v99, 4294901760
    %v877 = vsub.f32 %v99, %v876
    %v878 = vand.u32 %v877, 4294901760
    %879 = vmatpush1.msra.mxu0 %v878
    %880 = vmatprep.subr.mxu0 0.0
    %v881 = vand.u32 %v100, 4294901760
    %v882 = vsub.f32 %v100, %v881
    %v883 = vand.u32 %v882, 4294901760
    %884 = vmatpush1.msra.mxu0 %v883
    %885 = vmatprep.subr.mxu0 0.0
    %v886 = vand.u32 %v101, 4294901760
    %v887 = vsub.f32 %v101, %v886
    %v888 = vand.u32 %v887, 4294901760
    %889 = vmatpush1.msra.mxu0 %v888
    %890 = vmatprep.subr.mxu0 0.0
    %v891 = vand.u32 %v102, 4294901760
    %v892 = vsub.f32 %v102, %v891
    %v893 = vand.u32 %v892, 4294901760
    %894 = vmatpush1.msra.mxu0 %v893
    %895 = vmatprep.subr.mxu0 0.0
    %v896 = vand.u32 %v103, 4294901760
    %v897 = vsub.f32 %v103, %v896
    %v898 = vand.u32 %v897, 4294901760
    %899 = vmatpush1.msra.mxu0 %v898
    %900 = vmatprep.subr.mxu0 0.0
    %v901 = vand.u32 %v104, 4294901760
    %v902 = vsub.f32 %v104, %v901
    %v903 = vand.u32 %v902, 4294901760
    %904 = vmatpush1.msra.mxu0 %v903
    %905 = vmatprep.subr.mxu0 0.0
    %v906 = vand.u32 %v105, 4294901760
    %v907 = vsub.f32 %v105, %v906
    %v908 = vand.u32 %v907, 4294901760
    %909 = vmatpush1.msra.mxu0 %v908
    %v910 = vand.u32 %v147, 4294901760
    %911 = vmatprep.mubr.f32.mxu0 %v910
    %v912 = vand.u32 %v143, 4294901760
    %913 = vmatmul.mubr.f32.gmra.mrb[0].mxu0 %v912
    %v914 = vpop.f32.mrb[0].mxu0
    %v915 = vadd.f32 %v747, %v914
    %v916 = vpop.f32.mrb[0].mxu0
    %917 = vdwg.mxu0
    %918 = vmatprep.subr.mxu0 0.0
    %v919 = vand.u32 %v74, 4294901760
    %920 = vmatpush1.msra.mxu0 %v919
    %921 = vmatprep.subr.mxu0 0.0
    %v922 = vand.u32 %v75, 4294901760
    %923 = vmatpush1.msra.mxu0 %v922
    %924 = vmatprep.subr.mxu0 0.0
    %v925 = vand.u32 %v76, 4294901760
    %926 = vmatpush1.msra.mxu0 %v925
    %927 = vmatprep.subr.mxu0 0.0
    %v928 = vand.u32 %v77, 4294901760
    %929 = vmatpush1.msra.mxu0 %v928
    %930 = vmatprep.subr.mxu0 0.0
    %v931 = vand.u32 %v78, 4294901760
    %932 = vmatpush1.msra.mxu0 %v931
    %933 = vmatprep.subr.mxu0 0.0
    %v934 = vand.u32 %v79, 4294901760
    %935 = vmatpush1.msra.mxu0 %v934
    %936 = vmatprep.subr.mxu0 0.0
    %v937 = vand.u32 %v80, 4294901760
    %938 = vmatpush1.msra.mxu0 %v937
    %939 = vmatprep.subr.mxu0 0.0
    %v940 = vand.u32 %v81, 4294901760
    %941 = vmatpush1.msra.mxu0 %v940
    %942 = vmatprep.subr.mxu0 0.0
    %v943 = vand.u32 %v82, 4294901760
    %944 = vmatpush1.msra.mxu0 %v943
    %945 = vmatprep.subr.mxu0 0.0
    %v946 = vand.u32 %v83, 4294901760
    %947 = vmatpush1.msra.mxu0 %v946
    %948 = vmatprep.subr.mxu0 0.0
    %v949 = vand.u32 %v84, 4294901760
    %950 = vmatpush1.msra.mxu0 %v949
    %951 = vmatprep.subr.mxu0 0.0
    %v952 = vand.u32 %v85, 4294901760
    %953 = vmatpush1.msra.mxu0 %v952
    %954 = vmatprep.subr.mxu0 0.0
    %v955 = vand.u32 %v86, 4294901760
    %956 = vmatpush1.msra.mxu0 %v955
    %957 = vmatprep.subr.mxu0 0.0
    %v958 = vand.u32 %v87, 4294901760
    %959 = vmatpush1.msra.mxu0 %v958
    %960 = vmatprep.subr.mxu0 0.0
    %v961 = vand.u32 %v88, 4294901760
    %962 = vmatpush1.msra.mxu0 %v961
    %963 = vmatprep.subr.mxu0 0.0
    %v964 = vand.u32 %v89, 4294901760
    %965 = vmatpush1.msra.mxu0 %v964
    %966 = vmatprep.subr.mxu0 0.0
    %v967 = vand.u32 %v90, 4294901760
    %968 = vmatpush1.msra.mxu0 %v967
    %969 = vmatprep.subr.mxu0 0.0
    %v970 = vand.u32 %v91, 4294901760
    %971 = vmatpush1.msra.mxu0 %v970
    %972 = vmatprep.subr.mxu0 0.0
    %v973 = vand.u32 %v92, 4294901760
    %974 = vmatpush1.msra.mxu0 %v973
    %975 = vmatprep.subr.mxu0 0.0
    %v976 = vand.u32 %v93, 4294901760
    %977 = vmatpush1.msra.mxu0 %v976
    %978 = vmatprep.subr.mxu0 0.0
    %v979 = vand.u32 %v94, 4294901760
    %980 = vmatpush1.msra.mxu0 %v979
    %981 = vmatprep.subr.mxu0 0.0
    %v982 = vand.u32 %v95, 4294901760
    %983 = vmatpush1.msra.mxu0 %v982
    %984 = vmatprep.subr.mxu0 0.0
    %v985 = vand.u32 %v96, 4294901760
    %986 = vmatpush1.msra.mxu0 %v985
    %987 = vmatprep.subr.mxu0 0.0
    %v988 = vand.u32 %v97, 4294901760
    %989 = vmatpush1.msra.mxu0 %v988
    %990 = vmatprep.subr.mxu0 0.0
    %v991 = vand.u32 %v98, 4294901760
    %992 = vmatpush1.msra.mxu0 %v991
    %993 = vmatprep.subr.mxu0 0.0
    %v994 = vand.u32 %v99, 4294901760
    %995 = vmatpush1.msra.mxu0 %v994
    %996 = vmatprep.subr.mxu0 0.0
    %v997 = vand.u32 %v100, 4294901760
    %998 = vmatpush1.msra.mxu0 %v997
    %999 = vmatprep.subr.mxu0 0.0
    %v1000 = vand.u32 %v101, 4294901760
    %1001 = vmatpush1.msra.mxu0 %v1000
    %1002 = vmatprep.subr.mxu0 0.0
    %v1003 = vand.u32 %v102, 4294901760
    %1004 = vmatpush1.msra.mxu0 %v1003
    %1005 = vmatprep.subr.mxu0 0.0
    %v1006 = vand.u32 %v103, 4294901760
    %1007 = vmatpush1.msra.mxu0 %v1006
    %1008 = vmatprep.subr.mxu0 0.0
    %v1009 = vand.u32 %v104, 4294901760
    %1010 = vmatpush1.msra.mxu0 %v1009
    %1011 = vmatprep.subr.mxu0 0.0
    %v1012 = vand.u32 %v105, 4294901760
    %1013 = vmatpush1.msra.mxu0 %v1012
    %v1014 = vand.u32 %v147, 4294901760
    %1015 = vmatprep.mubr.f32.mxu0 %v1014
    %v1016 = vand.u32 %v143, 4294901760
    %1017 = vmatmul.mubr.f32.gmra.mrb[0].mxu0 %v1016
    %v1018 = vpop.f32.mrb[0].mxu0
    %v1019 = vadd.f32 %v915, %v1018
    %v1020 = vpop.f32.mrb[0].mxu0
    %1021 = vdwg.mxu0
    %1022 = vmatprep.subr.mxu0 0.0
    %v1023 = vand.u32 %v106, 4294901760
    %1024 = vmatpush1.msra.mxu0 %v1023
    %1025 = vmatprep.subr.mxu0 0.0
    %v1026 = vand.u32 %v107, 4294901760
    %1027 = vmatpush1.msra.mxu0 %v1026
    %1028 = vmatprep.subr.mxu0 0.0
    %v1029 = vand.u32 %v108, 4294901760
    %1030 = vmatpush1.msra.mxu0 %v1029
    %1031 = vmatprep.subr.mxu0 0.0
    %v1032 = vand.u32 %v109, 4294901760
    %1033 = vmatpush1.msra.mxu0 %v1032
    %1034 = vmatprep.subr.mxu0 0.0
    %v1035 = vand.u32 %v110, 4294901760
    %1036 = vmatpush1.msra.mxu0 %v1035
    %1037 = vmatprep.subr.mxu0 0.0
    %v1038 = vand.u32 %v111, 4294901760
    %1039 = vmatpush1.msra.mxu0 %v1038
    %1040 = vmatprep.subr.mxu0 0.0
    %v1041 = vand.u32 %v112, 4294901760
    %1042 = vmatpush1.msra.mxu0 %v1041
    %1043 = vmatprep.subr.mxu0 0.0
    %v1044 = vand.u32 %v113, 4294901760
    %1045 = vmatpush1.msra.mxu0 %v1044
    %1046 = vmatprep.subr.mxu0 0.0
    %v1047 = vand.u32 %v114, 4294901760
    %1048 = vmatpush1.msra.mxu0 %v1047
    %1049 = vmatprep.subr.mxu0 0.0
    %v1050 = vand.u32 %v115, 4294901760
    %1051 = vmatpush1.msra.mxu0 %v1050
    %1052 = vmatprep.subr.mxu0 0.0
    %v1053 = vand.u32 %v116, 4294901760
    %1054 = vmatpush1.msra.mxu0 %v1053
    %1055 = vmatprep.subr.mxu0 0.0
    %v1056 = vand.u32 %v117, 4294901760
    %1057 = vmatpush1.msra.mxu0 %v1056
    %1058 = vmatprep.subr.mxu0 0.0
    %v1059 = vand.u32 %v118, 4294901760
    %1060 = vmatpush1.msra.mxu0 %v1059
    %1061 = vmatprep.subr.mxu0 0.0
    %v1062 = vand.u32 %v119, 4294901760
    %1063 = vmatpush1.msra.mxu0 %v1062
    %1064 = vmatprep.subr.mxu0 0.0
    %v1065 = vand.u32 %v120, 4294901760
    %1066 = vmatpush1.msra.mxu0 %v1065
    %1067 = vmatprep.subr.mxu0 0.0
    %v1068 = vand.u32 %v121, 4294901760
    %1069 = vmatpush1.msra.mxu0 %v1068
    %1070 = vmatprep.subr.mxu0 0.0
    %v1071 = vand.u32 %v122, 4294901760
    %1072 = vmatpush1.msra.mxu0 %v1071
    %1073 = vmatprep.subr.mxu0 0.0
    %v1074 = vand.u32 %v123, 4294901760
    %1075 = vmatpush1.msra.mxu0 %v1074
    %1076 = vmatprep.subr.mxu0 0.0
    %v1077 = vand.u32 %v124, 4294901760
    %1078 = vmatpush1.msra.mxu0 %v1077
    %1079 = vmatprep.subr.mxu0 0.0
    %v1080 = vand.u32 %v125, 4294901760
    %1081 = vmatpush1.msra.mxu0 %v1080
    %1082 = vmatprep.subr.mxu0 0.0
    %v1083 = vand.u32 %v126, 4294901760
    %1084 = vmatpush1.msra.mxu0 %v1083
    %1085 = vmatprep.subr.mxu0 0.0
    %v1086 = vand.u32 %v127, 4294901760
    %1087 = vmatpush1.msra.mxu0 %v1086
    %1088 = vmatprep.subr.mxu0 0.0
    %v1089 = vand.u32 %v128, 4294901760
    %1090 = vmatpush1.msra.mxu0 %v1089
    %1091 = vmatprep.subr.mxu0 0.0
    %v1092 = vand.u32 %v129, 4294901760
    %1093 = vmatpush1.msra.mxu0 %v1092
    %1094 = vmatprep.subr.mxu0 0.0
    %v1095 = vand.u32 %v130, 4294901760
    %1096 = vmatpush1.msra.mxu0 %v1095
    %1097 = vmatprep.subr.mxu0 0.0
    %v1098 = vand.u32 %v131, 4294901760
    %1099 = vmatpush1.msra.mxu0 %v1098
    %1100 = vmatprep.subr.mxu0 0.0
    %v1101 = vand.u32 %v132, 4294901760
    %1102 = vmatpush1.msra.mxu0 %v1101
    %1103 = vmatprep.subr.mxu0 0.0
    %v1104 = vand.u32 %v133, 4294901760
    %1105 = vmatpush1.msra.mxu0 %v1104
    %1106 = vmatprep.subr.mxu0 0.0
    %v1107 = vand.u32 %v134, 4294901760
    %1108 = vmatpush1.msra.mxu0 %v1107
    %1109 = vmatprep.subr.mxu0 0.0
    %v1110 = vand.u32 %v135, 4294901760
    %1111 = vmatpush1.msra.mxu0 %v1110
    %1112 = vmatprep.subr.mxu0 0.0
    %v1113 = vand.u32 %v136, 4294901760
    %1114 = vmatpush1.msra.mxu0 %v1113
    %1115 = vmatprep.subr.mxu0 0.0
    %v1116 = vand.u32 %v137, 4294901760
    %1117 = vmatpush1.msra.mxu0 %v1116
    %v1118 = vand.u32 %v155, 4294901760
    %v1119 = vsub.f32 %v155, %v1118
    %v1120 = vand.u32 %v1119, 4294901760
    %v1121 = vsub.f32 %v1119, %v1120
    %v1122 = vand.u32 %v1121, 4294901760
    %1123 = vmatprep.mubr.f32.mxu0 %v1122
    %v1124 = vand.u32 %v151, 4294901760
    %v1125 = vsub.f32 %v151, %v1124
    %v1126 = vand.u32 %v1125, 4294901760
    %v1127 = vsub.f32 %v1125, %v1126
    %v1128 = vand.u32 %v1127, 4294901760
    %1129 = vmatmul.mubr.f32.gmra.mrb[0].mxu0 %v1128
    %v1130 = vpop.f32.mrb[0].mxu0
    %v1131 = vadd.f32 %v1019, %v1130
    %v1132 = vpop.f32.mrb[0].mxu0
    %1133 = vdwg.mxu0
    %1134 = vmatprep.subr.mxu0 0.0
    %v1135 = vand.u32 %v106, 4294901760
    %v1136 = vsub.f32 %v106, %v1135
    %v1137 = vand.u32 %v1136, 4294901760
    %v1138 = vsub.f32 %v1136, %v1137
    %v1139 = vand.u32 %v1138, 4294901760
    %1140 = vmatpush1.msra.mxu0 %v1139
    %1141 = vmatprep.subr.mxu0 0.0
    %v1142 = vand.u32 %v107, 4294901760
    %v1143 = vsub.f32 %v107, %v1142
    %v1144 = vand.u32 %v1143, 4294901760
    %v1145 = vsub.f32 %v1143, %v1144
    %v1146 = vand.u32 %v1145, 4294901760
    %1147 = vmatpush1.msra.mxu0 %v1146
    %1148 = vmatprep.subr.mxu0 0.0
    %v1149 = vand.u32 %v108, 4294901760
    %v1150 = vsub.f32 %v108, %v1149
    %v1151 = vand.u32 %v1150, 4294901760
    %v1152 = vsub.f32 %v1150, %v1151
    %v1153 = vand.u32 %v1152, 4294901760
    %1154 = vmatpush1.msra.mxu0 %v1153
    %1155 = vmatprep.subr.mxu0 0.0
    %v1156 = vand.u32 %v109, 4294901760
    %v1157 = vsub.f32 %v109, %v1156
    %v1158 = vand.u32 %v1157, 4294901760
    %v1159 = vsub.f32 %v1157, %v1158
    %v1160 = vand.u32 %v1159, 4294901760
    %1161 = vmatpush1.msra.mxu0 %v1160
    %1162 = vmatprep.subr.mxu0 0.0
    %v1163 = vand.u32 %v110, 4294901760
    %v1164 = vsub.f32 %v110, %v1163
    %v1165 = vand.u32 %v1164, 4294901760
    %v1166 = vsub.f32 %v1164, %v1165
    %v1167 = vand.u32 %v1166, 4294901760
    %1168 = vmatpush1.msra.mxu0 %v1167
    %1169 = vmatprep.subr.mxu0 0.0
    %v1170 = vand.u32 %v111, 4294901760
    %v1171 = vsub.f32 %v111, %v1170
    %v1172 = vand.u32 %v1171, 4294901760
    %v1173 = vsub.f32 %v1171, %v1172
    %v1174 = vand.u32 %v1173, 4294901760
    %1175 = vmatpush1.msra.mxu0 %v1174
    %1176 = vmatprep.subr.mxu0 0.0
    %v1177 = vand.u32 %v112, 4294901760
    %v1178 = vsub.f32 %v112, %v1177
    %v1179 = vand.u32 %v1178, 4294901760
    %v1180 = vsub.f32 %v1178, %v1179
    %v1181 = vand.u32 %v1180, 4294901760
    %1182 = vmatpush1.msra.mxu0 %v1181
    %1183 = vmatprep.subr.mxu0 0.0
    %v1184 = vand.u32 %v113, 4294901760
    %v1185 = vsub.f32 %v113, %v1184
    %v1186 = vand.u32 %v1185, 4294901760
    %v1187 = vsub.f32 %v1185, %v1186
    %v1188 = vand.u32 %v1187, 4294901760
    %1189 = vmatpush1.msra.mxu0 %v1188
    %1190 = vmatprep.subr.mxu0 0.0
    %v1191 = vand.u32 %v114, 4294901760
    %v1192 = vsub.f32 %v114, %v1191
    %v1193 = vand.u32 %v1192, 4294901760
    %v1194 = vsub.f32 %v1192, %v1193
    %v1195 = vand.u32 %v1194, 4294901760
    %1196 = vmatpush1.msra.mxu0 %v1195
    %1197 = vmatprep.subr.mxu0 0.0
    %v1198 = vand.u32 %v115, 4294901760
    %v1199 = vsub.f32 %v115, %v1198
    %v1200 = vand.u32 %v1199, 4294901760
    %v1201 = vsub.f32 %v1199, %v1200
    %v1202 = vand.u32 %v1201, 4294901760
    %1203 = vmatpush1.msra.mxu0 %v1202
    %1204 = vmatprep.subr.mxu0 0.0
    %v1205 = vand.u32 %v116, 4294901760
    %v1206 = vsub.f32 %v116, %v1205
    %v1207 = vand.u32 %v1206, 4294901760
    %v1208 = vsub.f32 %v1206, %v1207
    %v1209 = vand.u32 %v1208, 4294901760
    %1210 = vmatpush1.msra.mxu0 %v1209
    %1211 = vmatprep.subr.mxu0 0.0
    %v1212 = vand.u32 %v117, 4294901760
    %v1213 = vsub.f32 %v117, %v1212
    %v1214 = vand.u32 %v1213, 4294901760
    %v1215 = vsub.f32 %v1213, %v1214
    %v1216 = vand.u32 %v1215, 4294901760
    %1217 = vmatpush1.msra.mxu0 %v1216
    %1218 = vmatprep.subr.mxu0 0.0
    %v1219 = vand.u32 %v118, 4294901760
    %v1220 = vsub.f32 %v118, %v1219
    %v1221 = vand.u32 %v1220, 4294901760
    %v1222 = vsub.f32 %v1220, %v1221
    %v1223 = vand.u32 %v1222, 4294901760
    %1224 = vmatpush1.msra.mxu0 %v1223
    %1225 = vmatprep.subr.mxu0 0.0
    %v1226 = vand.u32 %v119, 4294901760
    %v1227 = vsub.f32 %v119, %v1226
    %v1228 = vand.u32 %v1227, 4294901760
    %v1229 = vsub.f32 %v1227, %v1228
    %v1230 = vand.u32 %v1229, 4294901760
    %1231 = vmatpush1.msra.mxu0 %v1230
    %1232 = vmatprep.subr.mxu0 0.0
    %v1233 = vand.u32 %v120, 4294901760
    %v1234 = vsub.f32 %v120, %v1233
    %v1235 = vand.u32 %v1234, 4294901760
    %v1236 = vsub.f32 %v1234, %v1235
    %v1237 = vand.u32 %v1236, 4294901760
    %1238 = vmatpush1.msra.mxu0 %v1237
    %1239 = vmatprep.subr.mxu0 0.0
    %v1240 = vand.u32 %v121, 4294901760
    %v1241 = vsub.f32 %v121, %v1240
    %v1242 = vand.u32 %v1241, 4294901760
    %v1243 = vsub.f32 %v1241, %v1242
    %v1244 = vand.u32 %v1243, 4294901760
    %1245 = vmatpush1.msra.mxu0 %v1244
    %1246 = vmatprep.subr.mxu0 0.0
    %v1247 = vand.u32 %v122, 4294901760
    %v1248 = vsub.f32 %v122, %v1247
    %v1249 = vand.u32 %v1248, 4294901760
    %v1250 = vsub.f32 %v1248, %v1249
    %v1251 = vand.u32 %v1250, 4294901760
    %1252 = vmatpush1.msra.mxu0 %v1251
    %1253 = vmatprep.subr.mxu0 0.0
    %v1254 = vand.u32 %v123, 4294901760
    %v1255 = vsub.f32 %v123, %v1254
    %v1256 = vand.u32 %v1255, 4294901760
    %v1257 = vsub.f32 %v1255, %v1256
    %v1258 = vand.u32 %v1257, 4294901760
    %1259 = vmatpush1.msra.mxu0 %v1258
    %1260 = vmatprep.subr.mxu0 0.0
    %v1261 = vand.u32 %v124, 4294901760
    %v1262 = vsub.f32 %v124, %v1261
    %v1263 = vand.u32 %v1262, 4294901760
    %v1264 = vsub.f32 %v1262, %v1263
    %v1265 = vand.u32 %v1264, 4294901760
    %1266 = vmatpush1.msra.mxu0 %v1265
    %1267 = vmatprep.subr.mxu0 0.0
    %v1268 = vand.u32 %v125, 4294901760
    %v1269 = vsub.f32 %v125, %v1268
    %v1270 = vand.u32 %v1269, 4294901760
    %v1271 = vsub.f32 %v1269, %v1270
    %v1272 = vand.u32 %v1271, 4294901760
    %1273 = vmatpush1.msra.mxu0 %v1272
    %1274 = vmatprep.subr.mxu0 0.0
    %v1275 = vand.u32 %v126, 4294901760
    %v1276 = vsub.f32 %v126, %v1275
    %v1277 = vand.u32 %v1276, 4294901760
    %v1278 = vsub.f32 %v1276, %v1277
    %v1279 = vand.u32 %v1278, 4294901760
    %1280 = vmatpush1.msra.mxu0 %v1279
    %1281 = vmatprep.subr.mxu0 0.0
    %v1282 = vand.u32 %v127, 4294901760
    %v1283 = vsub.f32 %v127, %v1282
    %v1284 = vand.u32 %v1283, 4294901760
    %v1285 = vsub.f32 %v1283, %v1284
    %v1286 = vand.u32 %v1285, 4294901760
    %1287 = vmatpush1.msra.mxu0 %v1286
    %1288 = vmatprep.subr.mxu0 0.0
    %v1289 = vand.u32 %v128, 4294901760
    %v1290 = vsub.f32 %v128, %v1289
    %v1291 = vand.u32 %v1290, 4294901760
    %v1292 = vsub.f32 %v1290, %v1291
    %v1293 = vand.u32 %v1292, 4294901760
    %1294 = vmatpush1.msra.mxu0 %v1293
    %1295 = vmatprep.subr.mxu0 0.0
    %v1296 = vand.u32 %v129, 4294901760
    %v1297 = vsub.f32 %v129, %v1296
    %v1298 = vand.u32 %v1297, 4294901760
    %v1299 = vsub.f32 %v1297, %v1298
    %v1300 = vand.u32 %v1299, 4294901760
    %1301 = vmatpush1.msra.mxu0 %v1300
    %1302 = vmatprep.subr.mxu0 0.0
    %v1303 = vand.u32 %v130, 4294901760
    %v1304 = vsub.f32 %v130, %v1303
    %v1305 = vand.u32 %v1304, 4294901760
    %v1306 = vsub.f32 %v1304, %v1305
    %v1307 = vand.u32 %v1306, 4294901760
    %1308 = vmatpush1.msra.mxu0 %v1307
    %1309 = vmatprep.subr.mxu0 0.0
    %v1310 = vand.u32 %v131, 4294901760
    %v1311 = vsub.f32 %v131, %v1310
    %v1312 = vand.u32 %v1311, 4294901760
    %v1313 = vsub.f32 %v1311, %v1312
    %v1314 = vand.u32 %v1313, 4294901760
    %1315 = vmatpush1.msra.mxu0 %v1314
    %1316 = vmatprep.subr.mxu0 0.0
    %v1317 = vand.u32 %v132, 4294901760
    %v1318 = vsub.f32 %v132, %v1317
    %v1319 = vand.u32 %v1318, 4294901760
    %v1320 = vsub.f32 %v1318, %v1319
    %v1321 = vand.u32 %v1320, 4294901760
    %1322 = vmatpush1.msra.mxu0 %v1321
    %1323 = vmatprep.subr.mxu0 0.0
    %v1324 = vand.u32 %v133, 4294901760
    %v1325 = vsub.f32 %v133, %v1324
    %v1326 = vand.u32 %v1325, 4294901760
    %v1327 = vsub.f32 %v1325, %v1326
    %v1328 = vand.u32 %v1327, 4294901760
    %1329 = vmatpush1.msra.mxu0 %v1328
    %1330 = vmatprep.subr.mxu0 0.0
    %v1331 = vand.u32 %v134, 4294901760
    %v1332 = vsub.f32 %v134, %v1331
    %v1333 = vand.u32 %v1332, 4294901760
    %v1334 = vsub.f32 %v1332, %v1333
    %v1335 = vand.u32 %v1334, 4294901760
    %1336 = vmatpush1.msra.mxu0 %v1335
    %1337 = vmatprep.subr.mxu0 0.0
    %v1338 = vand.u32 %v135, 4294901760
    %v1339 = vsub.f32 %v135, %v1338
    %v1340 = vand.u32 %v1339, 4294901760
    %v1341 = vsub.f32 %v1339, %v1340
    %v1342 = vand.u32 %v1341, 4294901760
    %1343 = vmatpush1.msra.mxu0 %v1342
    %1344 = vmatprep.subr.mxu0 0.0
    %v1345 = vand.u32 %v136, 4294901760
    %v1346 = vsub.f32 %v136, %v1345
    %v1347 = vand.u32 %v1346, 4294901760
    %v1348 = vsub.f32 %v1346, %v1347
    %v1349 = vand.u32 %v1348, 4294901760
    %1350 = vmatpush1.msra.mxu0 %v1349
    %1351 = vmatprep.subr.mxu0 0.0
    %v1352 = vand.u32 %v137, 4294901760
    %v1353 = vsub.f32 %v137, %v1352
    %v1354 = vand.u32 %v1353, 4294901760
    %v1355 = vsub.f32 %v1353, %v1354
    %v1356 = vand.u32 %v1355, 4294901760
    %1357 = vmatpush1.msra.mxu0 %v1356
    %v1358 = vand.u32 %v155, 4294901760
    %1359 = vmatprep.mubr.f32.mxu0 %v1358
    %v1360 = vand.u32 %v151, 4294901760
    %1361 = vmatmul.mubr.f32.gmra.mrb[0].mxu0 %v1360
    %v1362 = vpop.f32.mrb[0].mxu0
    %v1363 = vadd.f32 %v1131, %v1362
    %v1364 = vpop.f32.mrb[0].mxu0
    %1365 = vdwg.mxu0
    %1366 = vmatprep.subr.mxu0 0.0
    %v1367 = vand.u32 %v106, 4294901760
    %v1368 = vsub.f32 %v106, %v1367
    %1369 = vmatpush1.msra.mxu0 %v1368
    %1370 = vmatprep.subr.mxu0 0.0
    %v1371 = vand.u32 %v107, 4294901760
    %v1372 = vsub.f32 %v107, %v1371
    %1373 = vmatpush1.msra.mxu0 %v1372
    %1374 = vmatprep.subr.mxu0 0.0
    %v1375 = vand.u32 %v108, 4294901760
    %v1376 = vsub.f32 %v108, %v1375
    %1377 = vmatpush1.msra.mxu0 %v1376
    %1378 = vmatprep.subr.mxu0 0.0
    %v1379 = vand.u32 %v109, 4294901760
    %v1380 = vsub.f32 %v109, %v1379
    %1381 = vmatpush1.msra.mxu0 %v1380
    %1382 = vmatprep.subr.mxu0 0.0
    %v1383 = vand.u32 %v110, 4294901760
    %v1384 = vsub.f32 %v110, %v1383
    %1385 = vmatpush1.msra.mxu0 %v1384
    %1386 = vmatprep.subr.mxu0 0.0
    %v1387 = vand.u32 %v111, 4294901760
    %v1388 = vsub.f32 %v111, %v1387
    %1389 = vmatpush1.msra.mxu0 %v1388
    %1390 = vmatprep.subr.mxu0 0.0
    %v1391 = vand.u32 %v112, 4294901760
    %v1392 = vsub.f32 %v112, %v1391
    %1393 = vmatpush1.msra.mxu0 %v1392
    %1394 = vmatprep.subr.mxu0 0.0
    %v1395 = vand.u32 %v113, 4294901760
    %v1396 = vsub.f32 %v113, %v1395
    %1397 = vmatpush1.msra.mxu0 %v1396
    %1398 = vmatprep.subr.mxu0 0.0
    %v1399 = vand.u32 %v114, 4294901760
    %v1400 = vsub.f32 %v114, %v1399
    %1401 = vmatpush1.msra.mxu0 %v1400
    %1402 = vmatprep.subr.mxu0 0.0
    %v1403 = vand.u32 %v115, 4294901760
    %v1404 = vsub.f32 %v115, %v1403
    %1405 = vmatpush1.msra.mxu0 %v1404
    %1406 = vmatprep.subr.mxu0 0.0
    %v1407 = vand.u32 %v116, 4294901760
    %v1408 = vsub.f32 %v116, %v1407
    %1409 = vmatpush1.msra.mxu0 %v1408
    %1410 = vmatprep.subr.mxu0 0.0
    %v1411 = vand.u32 %v117, 4294901760
    %v1412 = vsub.f32 %v117, %v1411
    %1413 = vmatpush1.msra.mxu0 %v1412
    %1414 = vmatprep.subr.mxu0 0.0
    %v1415 = vand.u32 %v118, 4294901760
    %v1416 = vsub.f32 %v118, %v1415
    %1417 = vmatpush1.msra.mxu0 %v1416
    %1418 = vmatprep.subr.mxu0 0.0
    %v1419 = vand.u32 %v119, 4294901760
    %v1420 = vsub.f32 %v119, %v1419
    %1421 = vmatpush1.msra.mxu0 %v1420
    %1422 = vmatprep.subr.mxu0 0.0
    %v1423 = vand.u32 %v120, 4294901760
    %v1424 = vsub.f32 %v120, %v1423
    %1425 = vmatpush1.msra.mxu0 %v1424
    %1426 = vmatprep.subr.mxu0 0.0
    %v1427 = vand.u32 %v121, 4294901760
    %v1428 = vsub.f32 %v121, %v1427
    %1429 = vmatpush1.msra.mxu0 %v1428
    %1430 = vmatprep.subr.mxu0 0.0
    %v1431 = vand.u32 %v122, 4294901760
    %v1432 = vsub.f32 %v122, %v1431
    %1433 = vmatpush1.msra.mxu0 %v1432
    %1434 = vmatprep.subr.mxu0 0.0
    %v1435 = vand.u32 %v123, 4294901760
    %v1436 = vsub.f32 %v123, %v1435
    %1437 = vmatpush1.msra.mxu0 %v1436
    %1438 = vmatprep.subr.mxu0 0.0
    %v1439 = vand.u32 %v124, 4294901760
    %v1440 = vsub.f32 %v124, %v1439
    %1441 = vmatpush1.msra.mxu0 %v1440
    %1442 = vmatprep.subr.mxu0 0.0
    %v1443 = vand.u32 %v125, 4294901760
    %v1444 = vsub.f32 %v125, %v1443
    %1445 = vmatpush1.msra.mxu0 %v1444
    %1446 = vmatprep.subr.mxu0 0.0
    %v1447 = vand.u32 %v126, 4294901760
    %v1448 = vsub.f32 %v126, %v1447
    %1449 = vmatpush1.msra.mxu0 %v1448
    %1450 = vmatprep.subr.mxu0 0.0
    %v1451 = vand.u32 %v127, 4294901760
    %v1452 = vsub.f32 %v127, %v1451
    %1453 = vmatpush1.msra.mxu0 %v1452
    %1454 = vmatprep.subr.mxu0 0.0
    %v1455 = vand.u32 %v128, 4294901760
    %v1456 = vsub.f32 %v128, %v1455
    %1457 = vmatpush1.msra.mxu0 %v1456
    %1458 = vmatprep.subr.mxu0 0.0
    %v1459 = vand.u32 %v129, 4294901760
    %v1460 = vsub.f32 %v129, %v1459
    %1461 = vmatpush1.msra.mxu0 %v1460
    %1462 = vmatprep.subr.mxu0 0.0
    %v1463 = vand.u32 %v130, 4294901760
    %v1464 = vsub.f32 %v130, %v1463
    %1465 = vmatpush1.msra.mxu0 %v1464
    %1466 = vmatprep.subr.mxu0 0.0
    %v1467 = vand.u32 %v131, 4294901760
    %v1468 = vsub.f32 %v131, %v1467
    %1469 = vmatpush1.msra.mxu0 %v1468
    %1470 = vmatprep.subr.mxu0 0.0
    %v1471 = vand.u32 %v132, 4294901760
    %v1472 = vsub.f32 %v132, %v1471
    %1473 = vmatpush1.msra.mxu0 %v1472
    %1474 = vmatprep.subr.mxu0 0.0
    %v1475 = vand.u32 %v133, 4294901760
    %v1476 = vsub.f32 %v133, %v1475
    %1477 = vmatpush1.msra.mxu0 %v1476
    %1478 = vmatprep.subr.mxu0 0.0
    %v1479 = vand.u32 %v134, 4294901760
    %v1480 = vsub.f32 %v134, %v1479
    %1481 = vmatpush1.msra.mxu0 %v1480
    %1482 = vmatprep.subr.mxu0 0.0
    %v1483 = vand.u32 %v135, 4294901760
    %v1484 = vsub.f32 %v135, %v1483
    %1485 = vmatpush1.msra.mxu0 %v1484
    %1486 = vmatprep.subr.mxu0 0.0
    %v1487 = vand.u32 %v136, 4294901760
    %v1488 = vsub.f32 %v136, %v1487
    %1489 = vmatpush1.msra.mxu0 %v1488
    %1490 = vmatprep.subr.mxu0 0.0
    %v1491 = vand.u32 %v137, 4294901760
    %v1492 = vsub.f32 %v137, %v1491
    %1493 = vmatpush1.msra.mxu0 %v1492
    %v1494 = vand.u32 %v155, 4294901760
    %v1495 = vsub.f32 %v155, %v1494
    %1496 = vmatprep.mubr.f32.mxu0 %v1495
    %v1497 = vand.u32 %v151, 4294901760
    %v1498 = vsub.f32 %v151, %v1497
    %1499 = vmatmul.mubr.f32.gmra.mrb[0].mxu0 %v1498
    %v1500 = vpop.f32.mrb[0].mxu0
    %v1501 = vadd.f32 %v1363, %v1500
    %v1502 = vpop.f32.mrb[0].mxu0
    %1503 = vdwg.mxu0
    %1504 = vmatprep.subr.mxu0 0.0
    %v1505 = vand.u32 %v106, 4294901760
    %1506 = vmatpush1.msra.mxu0 %v1505
    %1507 = vmatprep.subr.mxu0 0.0
    %v1508 = vand.u32 %v107, 4294901760
    %1509 = vmatpush1.msra.mxu0 %v1508
    %1510 = vmatprep.subr.mxu0 0.0
    %v1511 = vand.u32 %v108, 4294901760
    %1512 = vmatpush1.msra.mxu0 %v1511
    %1513 = vmatprep.subr.mxu0 0.0
    %v1514 = vand.u32 %v109, 4294901760
    %1515 = vmatpush1.msra.mxu0 %v1514
    %1516 = vmatprep.subr.mxu0 0.0
    %v1517 = vand.u32 %v110, 4294901760
    %1518 = vmatpush1.msra.mxu0 %v1517
    %1519 = vmatprep.subr.mxu0 0.0
    %v1520 = vand.u32 %v111, 4294901760
    %1521 = vmatpush1.msra.mxu0 %v1520
    %1522 = vmatprep.subr.mxu0 0.0
    %v1523 = vand.u32 %v112, 4294901760
    %1524 = vmatpush1.msra.mxu0 %v1523
    %1525 = vmatprep.subr.mxu0 0.0
    %v1526 = vand.u32 %v113, 4294901760
    %1527 = vmatpush1.msra.mxu0 %v1526
    %1528 = vmatprep.subr.mxu0 0.0
    %v1529 = vand.u32 %v114, 4294901760
    %1530 = vmatpush1.msra.mxu0 %v1529
    %1531 = vmatprep.subr.mxu0 0.0
    %v1532 = vand.u32 %v115, 4294901760
    %1533 = vmatpush1.msra.mxu0 %v1532
    %1534 = vmatprep.subr.mxu0 0.0
    %v1535 = vand.u32 %v116, 4294901760
    %1536 = vmatpush1.msra.mxu0 %v1535
    %1537 = vmatprep.subr.mxu0 0.0
    %v1538 = vand.u32 %v117, 4294901760
    %1539 = vmatpush1.msra.mxu0 %v1538
    %1540 = vmatprep.subr.mxu0 0.0
    %v1541 = vand.u32 %v118, 4294901760
    %1542 = vmatpush1.msra.mxu0 %v1541
    %1543 = vmatprep.subr.mxu0 0.0
    %v1544 = vand.u32 %v119, 4294901760
    %1545 = vmatpush1.msra.mxu0 %v1544
    %1546 = vmatprep.subr.mxu0 0.0
    %v1547 = vand.u32 %v120, 4294901760
    %1548 = vmatpush1.msra.mxu0 %v1547
    %1549 = vmatprep.subr.mxu0 0.0
    %v1550 = vand.u32 %v121, 4294901760
    %1551 = vmatpush1.msra.mxu0 %v1550
    %1552 = vmatprep.subr.mxu0 0.0
    %v1553 = vand.u32 %v122, 4294901760
    %1554 = vmatpush1.msra.mxu0 %v1553
    %1555 = vmatprep.subr.mxu0 0.0
    %v1556 = vand.u32 %v123, 4294901760
    %1557 = vmatpush1.msra.mxu0 %v1556
    %1558 = vmatprep.subr.mxu0 0.0
    %v1559 = vand.u32 %v124, 4294901760
    %1560 = vmatpush1.msra.mxu0 %v1559
    %1561 = vmatprep.subr.mxu0 0.0
    %v1562 = vand.u32 %v125, 4294901760
    %1563 = vmatpush1.msra.mxu0 %v1562
    %1564 = vmatprep.subr.mxu0 0.0
    %v1565 = vand.u32 %v126, 4294901760
    %1566 = vmatpush1.msra.mxu0 %v1565
    %1567 = vmatprep.subr.mxu0 0.0
    %v1568 = vand.u32 %v127, 4294901760
    %1569 = vmatpush1.msra.mxu0 %v1568
    %1570 = vmatprep.subr.mxu0 0.0
    %v1571 = vand.u32 %v128, 4294901760
    %1572 = vmatpush1.msra.mxu0 %v1571
    %1573 = vmatprep.subr.mxu0 0.0
    %v1574 = vand.u32 %v129, 4294901760
    %1575 = vmatpush1.msra.mxu0 %v1574
    %1576 = vmatprep.subr.mxu0 0.0
    %v1577 = vand.u32 %v130, 4294901760
    %1578 = vmatpush1.msra.mxu0 %v1577
    %1579 = vmatprep.subr.mxu0 0.0
    %v1580 = vand.u32 %v131, 4294901760
    %1581 = vmatpush1.msra.mxu0 %v1580
    %1582 = vmatprep.subr.mxu0 0.0
    %v1583 = vand.u32 %v132, 4294901760
    %1584 = vmatpush1.msra.mxu0 %v1583
    %1585 = vmatprep.subr.mxu0 0.0
    %v1586 = vand.u32 %v133, 4294901760
    %1587 = vmatpush1.msra.mxu0 %v1586
    %1588 = vmatprep.subr.mxu0 0.0
    %v1589 = vand.u32 %v134, 4294901760
    %1590 = vmatpush1.msra.mxu0 %v1589
    %1591 = vmatprep.subr.mxu0 0.0
    %v1592 = vand.u32 %v135, 4294901760
    %1593 = vmatpush1.msra.mxu0 %v1592
    %1594 = vmatprep.subr.mxu0 0.0
    %v1595 = vand.u32 %v136, 4294901760
    %1596 = vmatpush1.msra.mxu0 %v1595
    %1597 = vmatprep.subr.mxu0 0.0
    %v1598 = vand.u32 %v137, 4294901760
    %1599 = vmatpush1.msra.mxu0 %v1598
    %v1600 = vand.u32 %v155, 4294901760
    %v1601 = vsub.f32 %v155, %v1600
    %v1602 = vand.u32 %v1601, 4294901760
    %1603 = vmatprep.mubr.f32.mxu0 %v1602
    %v1604 = vand.u32 %v151, 4294901760
    %v1605 = vsub.f32 %v151, %v1604
    %v1606 = vand.u32 %v1605, 4294901760
    %1607 = vmatmul.mubr.f32.gmra.mrb[0].mxu0 %v1606
    %v1608 = vpop.f32.mrb[0].mxu0
    %v1609 = vadd.f32 %v1501, %v1608
    %v1610 = vpop.f32.mrb[0].mxu0
    %1611 = vdwg.mxu0
    %1612 = vmatprep.subr.mxu0 0.0
    %v1613 = vand.u32 %v106, 4294901760
    %v1614 = vsub.f32 %v106, %v1613
    %v1615 = vand.u32 %v1614, 4294901760
    %1616 = vmatpush1.msra.mxu0 %v1615
    %1617 = vmatprep.subr.mxu0 0.0
    %v1618 = vand.u32 %v107, 4294901760
    %v1619 = vsub.f32 %v107, %v1618
    %v1620 = vand.u32 %v1619, 4294901760
    %1621 = vmatpush1.msra.mxu0 %v1620
    %1622 = vmatprep.subr.mxu0 0.0
    %v1623 = vand.u32 %v108, 4294901760
    %v1624 = vsub.f32 %v108, %v1623
    %v1625 = vand.u32 %v1624, 4294901760
    %1626 = vmatpush1.msra.mxu0 %v1625
    %1627 = vmatprep.subr.mxu0 0.0
    %v1628 = vand.u32 %v109, 4294901760
    %v1629 = vsub.f32 %v109, %v1628
    %v1630 = vand.u32 %v1629, 4294901760
    %1631 = vmatpush1.msra.mxu0 %v1630
    %1632 = vmatprep.subr.mxu0 0.0
    %v1633 = vand.u32 %v110, 4294901760
    %v1634 = vsub.f32 %v110, %v1633
    %v1635 = vand.u32 %v1634, 4294901760
    %1636 = vmatpush1.msra.mxu0 %v1635
    %1637 = vmatprep.subr.mxu0 0.0
    %v1638 = vand.u32 %v111, 4294901760
    %v1639 = vsub.f32 %v111, %v1638
    %v1640 = vand.u32 %v1639, 4294901760
    %1641 = vmatpush1.msra.mxu0 %v1640
    %1642 = vmatprep.subr.mxu0 0.0
    %v1643 = vand.u32 %v112, 4294901760
    %v1644 = vsub.f32 %v112, %v1643
    %v1645 = vand.u32 %v1644, 4294901760
    %1646 = vmatpush1.msra.mxu0 %v1645
    %1647 = vmatprep.subr.mxu0 0.0
    %v1648 = vand.u32 %v113, 4294901760
    %v1649 = vsub.f32 %v113, %v1648
    %v1650 = vand.u32 %v1649, 4294901760
    %1651 = vmatpush1.msra.mxu0 %v1650
    %1652 = vmatprep.subr.mxu0 0.0
    %v1653 = vand.u32 %v114, 4294901760
    %v1654 = vsub.f32 %v114, %v1653
    %v1655 = vand.u32 %v1654, 4294901760
    %1656 = vmatpush1.msra.mxu0 %v1655
    %1657 = vmatprep.subr.mxu0 0.0
    %v1658 = vand.u32 %v115, 4294901760
    %v1659 = vsub.f32 %v115, %v1658
    %v1660 = vand.u32 %v1659, 4294901760
    %1661 = vmatpush1.msra.mxu0 %v1660
    %1662 = vmatprep.subr.mxu0 0.0
    %v1663 = vand.u32 %v116, 4294901760
    %v1664 = vsub.f32 %v116, %v1663
    %v1665 = vand.u32 %v1664, 4294901760
    %1666 = vmatpush1.msra.mxu0 %v1665
    %1667 = vmatprep.subr.mxu0 0.0
    %v1668 = vand.u32 %v117, 4294901760
    %v1669 = vsub.f32 %v117, %v1668
    %v1670 = vand.u32 %v1669, 4294901760
    %1671 = vmatpush1.msra.mxu0 %v1670
    %1672 = vmatprep.subr.mxu0 0.0
    %v1673 = vand.u32 %v118, 4294901760
    %v1674 = vsub.f32 %v118, %v1673
    %v1675 = vand.u32 %v1674, 4294901760
    %1676 = vmatpush1.msra.mxu0 %v1675
    %1677 = vmatprep.subr.mxu0 0.0
    %v1678 = vand.u32 %v119, 4294901760
    %v1679 = vsub.f32 %v119, %v1678
    %v1680 = vand.u32 %v1679, 4294901760
    %1681 = vmatpush1.msra.mxu0 %v1680
    %1682 = vmatprep.subr.mxu0 0.0
    %v1683 = vand.u32 %v120, 4294901760
    %v1684 = vsub.f32 %v120, %v1683
    %v1685 = vand.u32 %v1684, 4294901760
    %1686 = vmatpush1.msra.mxu0 %v1685
    %1687 = vmatprep.subr.mxu0 0.0
    %v1688 = vand.u32 %v121, 4294901760
    %v1689 = vsub.f32 %v121, %v1688
    %v1690 = vand.u32 %v1689, 4294901760
    %1691 = vmatpush1.msra.mxu0 %v1690
    %1692 = vmatprep.subr.mxu0 0.0
    %v1693 = vand.u32 %v122, 4294901760
    %v1694 = vsub.f32 %v122, %v1693
    %v1695 = vand.u32 %v1694, 4294901760
    %1696 = vmatpush1.msra.mxu0 %v1695
    %1697 = vmatprep.subr.mxu0 0.0
    %v1698 = vand.u32 %v123, 4294901760
    %v1699 = vsub.f32 %v123, %v1698
    %v1700 = vand.u32 %v1699, 4294901760
    %1701 = vmatpush1.msra.mxu0 %v1700
    %1702 = vmatprep.subr.mxu0 0.0
    %v1703 = vand.u32 %v124, 4294901760
    %v1704 = vsub.f32 %v124, %v1703
    %v1705 = vand.u32 %v1704, 4294901760
    %1706 = vmatpush1.msra.mxu0 %v1705
    %1707 = vmatprep.subr.mxu0 0.0
    %v1708 = vand.u32 %v125, 4294901760
    %v1709 = vsub.f32 %v125, %v1708
    %v1710 = vand.u32 %v1709, 4294901760
    %1711 = vmatpush1.msra.mxu0 %v1710
    %1712 = vmatprep.subr.mxu0 0.0
    %v1713 = vand.u32 %v126, 4294901760
    %v1714 = vsub.f32 %v126, %v1713
    %v1715 = vand.u32 %v1714, 4294901760
    %1716 = vmatpush1.msra.mxu0 %v1715
    %1717 = vmatprep.subr.mxu0 0.0
    %v1718 = vand.u32 %v127, 4294901760
    %v1719 = vsub.f32 %v127, %v1718
    %v1720 = vand.u32 %v1719, 4294901760
    %1721 = vmatpush1.msra.mxu0 %v1720
    %1722 = vmatprep.subr.mxu0 0.0
    %v1723 = vand.u32 %v128, 4294901760
    %v1724 = vsub.f32 %v128, %v1723
    %v1725 = vand.u32 %v1724, 4294901760
    %1726 = vmatpush1.msra.mxu0 %v1725
    %1727 = vmatprep.subr.mxu0 0.0
    %v1728 = vand.u32 %v129, 4294901760
    %v1729 = vsub.f32 %v129, %v1728
    %v1730 = vand.u32 %v1729, 4294901760
    %1731 = vmatpush1.msra.mxu0 %v1730
    %1732 = vmatprep.subr.mxu0 0.0
    %v1733 = vand.u32 %v130, 4294901760
    %v1734 = vsub.f32 %v130, %v1733
    %v1735 = vand.u32 %v1734, 4294901760
    %1736 = vmatpush1.msra.mxu0 %v1735
    %1737 = vmatprep.subr.mxu0 0.0
    %v1738 = vand.u32 %v131, 4294901760
    %v1739 = vsub.f32 %v131, %v1738
    %v1740 = vand.u32 %v1739, 4294901760
    %1741 = vmatpush1.msra.mxu0 %v1740
    %1742 = vmatprep.subr.mxu0 0.0
    %v1743 = vand.u32 %v132, 4294901760
    %v1744 = vsub.f32 %v132, %v1743
    %v1745 = vand.u32 %v1744, 4294901760
    %1746 = vmatpush1.msra.mxu0 %v1745
    %1747 = vmatprep.subr.mxu0 0.0
    %v1748 = vand.u32 %v133, 4294901760
    %v1749 = vsub.f32 %v133, %v1748
    %v1750 = vand.u32 %v1749, 4294901760
    %1751 = vmatpush1.msra.mxu0 %v1750
    %1752 = vmatprep.subr.mxu0 0.0
    %v1753 = vand.u32 %v134, 4294901760
    %v1754 = vsub.f32 %v134, %v1753
    %v1755 = vand.u32 %v1754, 4294901760
    %1756 = vmatpush1.msra.mxu0 %v1755
    %1757 = vmatprep.subr.mxu0 0.0
    %v1758 = vand.u32 %v135, 4294901760
    %v1759 = vsub.f32 %v135, %v1758
    %v1760 = vand.u32 %v1759, 4294901760
    %1761 = vmatpush1.msra.mxu0 %v1760
    %1762 = vmatprep.subr.mxu0 0.0
    %v1763 = vand.u32 %v136, 4294901760
    %v1764 = vsub.f32 %v136, %v1763
    %v1765 = vand.u32 %v1764, 4294901760
    %1766 = vmatpush1.msra.mxu0 %v1765
    %1767 = vmatprep.subr.mxu0 0.0
    %v1768 = vand.u32 %v137, 4294901760
    %v1769 = vsub.f32 %v137, %v1768
    %v1770 = vand.u32 %v1769, 4294901760
    %1771 = vmatpush1.msra.mxu0 %v1770
    %v1772 = vand.u32 %v155, 4294901760
    %1773 = vmatprep.mubr.f32.mxu0 %v1772
    %v1774 = vand.u32 %v151, 4294901760
    %1775 = vmatmul.mubr.f32.gmra.mrb[0].mxu0 %v1774
    %v1776 = vpop.f32.mrb[0].mxu0
    %v1777 = vadd.f32 %v1609, %v1776
    %v1778 = vpop.f32.mrb[0].mxu0
    %1779 = vdwg.mxu0
    %1780 = vmatprep.subr.mxu0 0.0
    %v1781 = vand.u32 %v106, 4294901760
    %1782 = vmatpush1.msra.mxu0 %v1781
    %1783 = vmatprep.subr.mxu0 0.0
    %v1784 = vand.u32 %v107, 4294901760
    %1785 = vmatpush1.msra.mxu0 %v1784
    %1786 = vmatprep.subr.mxu0 0.0
    %v1787 = vand.u32 %v108, 4294901760
    %1788 = vmatpush1.msra.mxu0 %v1787
    %1789 = vmatprep.subr.mxu0 0.0
    %v1790 = vand.u32 %v109, 4294901760
    %1791 = vmatpush1.msra.mxu0 %v1790
    %1792 = vmatprep.subr.mxu0 0.0
    %v1793 = vand.u32 %v110, 4294901760
    %1794 = vmatpush1.msra.mxu0 %v1793
    %1795 = vmatprep.subr.mxu0 0.0
    %v1796 = vand.u32 %v111, 4294901760
    %1797 = vmatpush1.msra.mxu0 %v1796
    %1798 = vmatprep.subr.mxu0 0.0
    %v1799 = vand.u32 %v112, 4294901760
    %1800 = vmatpush1.msra.mxu0 %v1799
    %1801 = vmatprep.subr.mxu0 0.0
    %v1802 = vand.u32 %v113, 4294901760
    %1803 = vmatpush1.msra.mxu0 %v1802
    %1804 = vmatprep.subr.mxu0 0.0
    %v1805 = vand.u32 %v114, 4294901760
    %1806 = vmatpush1.msra.mxu0 %v1805
    %1807 = vmatprep.subr.mxu0 0.0
    %v1808 = vand.u32 %v115, 4294901760
    %1809 = vmatpush1.msra.mxu0 %v1808
    %1810 = vmatprep.subr.mxu0 0.0
    %v1811 = vand.u32 %v116, 4294901760
    %1812 = vmatpush1.msra.mxu0 %v1811
    %1813 = vmatprep.subr.mxu0 0.0
    %v1814 = vand.u32 %v117, 4294901760
    %1815 = vmatpush1.msra.mxu0 %v1814
    %1816 = vmatprep.subr.mxu0 0.0
    %v1817 = vand.u32 %v118, 4294901760
    %1818 = vmatpush1.msra.mxu0 %v1817
    %1819 = vmatprep.subr.mxu0 0.0
    %v1820 = vand.u32 %v119, 4294901760
    %1821 = vmatpush1.msra.mxu0 %v1820
    %1822 = vmatprep.subr.mxu0 0.0
    %v1823 = vand.u32 %v120, 4294901760
    %1824 = vmatpush1.msra.mxu0 %v1823
    %1825 = vmatprep.subr.mxu0 0.0
    %v1826 = vand.u32 %v121, 4294901760
    %1827 = vmatpush1.msra.mxu0 %v1826
    %1828 = vmatprep.subr.mxu0 0.0
    %v1829 = vand.u32 %v122, 4294901760
    %1830 = vmatpush1.msra.mxu0 %v1829
    %1831 = vmatprep.subr.mxu0 0.0
    %v1832 = vand.u32 %v123, 4294901760
    %1833 = vmatpush1.msra.mxu0 %v1832
    %1834 = vmatprep.subr.mxu0 0.0
    %v1835 = vand.u32 %v124, 4294901760
    %1836 = vmatpush1.msra.mxu0 %v1835
    %1837 = vmatprep.subr.mxu0 0.0
    %v1838 = vand.u32 %v125, 4294901760
    %1839 = vmatpush1.msra.mxu0 %v1838
    %1840 = vmatprep.subr.mxu0 0.0
    %v1841 = vand.u32 %v126, 4294901760
    %1842 = vmatpush1.msra.mxu0 %v1841
    %1843 = vmatprep.subr.mxu0 0.0
    %v1844 = vand.u32 %v127, 4294901760
    %1845 = vmatpush1.msra.mxu0 %v1844
    %1846 = vmatprep.subr.mxu0 0.0
    %v1847 = vand.u32 %v128, 4294901760
    %1848 = vmatpush1.msra.mxu0 %v1847
    %1849 = vmatprep.subr.mxu0 0.0
    %v1850 = vand.u32 %v129, 4294901760
    %1851 = vmatpush1.msra.mxu0 %v1850
    %1852 = vmatprep.subr.mxu0 0.0
    %v1853 = vand.u32 %v130, 4294901760
    %1854 = vmatpush1.msra.mxu0 %v1853
    %1855 = vmatprep.subr.mxu0 0.0
    %v1856 = vand.u32 %v131, 4294901760
    %1857 = vmatpush1.msra.mxu0 %v1856
    %1858 = vmatprep.subr.mxu0 0.0
    %v1859 = vand.u32 %v132, 4294901760
    %1860 = vmatpush1.msra.mxu0 %v1859
    %1861 = vmatprep.subr.mxu0 0.0
    %v1862 = vand.u32 %v133, 4294901760
    %1863 = vmatpush1.msra.mxu0 %v1862
    %1864 = vmatprep.subr.mxu0 0.0
    %v1865 = vand.u32 %v134, 4294901760
    %1866 = vmatpush1.msra.mxu0 %v1865
    %1867 = vmatprep.subr.mxu0 0.0
    %v1868 = vand.u32 %v135, 4294901760
    %1869 = vmatpush1.msra.mxu0 %v1868
    %1870 = vmatprep.subr.mxu0 0.0
    %v1871 = vand.u32 %v136, 4294901760
    %1872 = vmatpush1.msra.mxu0 %v1871
    %1873 = vmatprep.subr.mxu0 0.0
    %v1874 = vand.u32 %v137, 4294901760
    %1875 = vmatpush1.msra.mxu0 %v1874
    %v1876 = vand.u32 %v155, 4294901760
    %1877 = vmatprep.mubr.f32.mxu0 %v1876
    %v1878 = vand.u32 %v151, 4294901760
    %1879 = vmatmul.mubr.f32.gmra.mrb[0].mxu0 %v1878
    %v1880 = vpop.f32.mrb[0].mxu0
    %v1881 = vadd.f32 %v1777, %v1880
    %v1882 = vpop.f32.mrb[0].mxu0
    %1883 = vdwg.mxu0
    %1884 = vst [vmem:[#allocation9] sm:$0x1] %v1881
    // Predicated region
    $region30: #{tpu_custom_call.1} parent=1 // pred_check
      _
    $region31: #{tpu_custom_call.1} parent=1 // pred_check_branch
      %1886 = sbr.rel (0) target = $region33
    $region32: #{tpu_custom_call.1} parent=1 // pred_region
      %s1888 = ssub.s32 16, 16
      %1889 = vsyncadd [#allocation5], %s1888
      %s1891 = sshll.u32 [#allocation9], 4
      %s1892 = int_to_ptr.vmem [resolvable:$true] %s1891
      %1894 = dma.vmem_to_hbm [thread:$0]  %s1892, 16, %s4, [#allocation5]
    $region33: #{tpu_custom_call.1} parent=1 // pred_fallthru
      _
    // Predicated region
    $region34: #{tpu_custom_call.1} parent=1 // pred_check
      _
    $region35: #{tpu_custom_call.1} parent=1 // pred_check_branch
      %1896 = sbr.rel (0) target = $region37
    $region36: #{tpu_custom_call.1} parent=1 // pred_region
      %1897 = dma.done [#allocation5], 16
    $region37: #{tpu_custom_call.1} parent=1 // pred_fallthru
      _
    %1898 = vsyncpa [#allocation4], 1
    %1899 = vsyncpa [#allocation7], 1
    %1900 = vsyncpa [#allocation5], 1

</llo_original>
